<compile_context>
chip_gen: v7x
topology: tpu7x:2x2x1
jax: 0.10.0
libtpu: 0.0.40
codegen_flags: <defaults>
</compile_context>

<pallas_src>
import functools

import jax
import jax.numpy as jnp
from jax.experimental import pallas as pl
from jax.experimental.pallas import tpu as pltpu

PAD = 128        # padded hidden feature width (lane dim)
SUB = 128        # rows per inner sub-block (one MXU tile of rows)
MAX_SUBS = 4     # up to 512 rows per grid step


def _mlp_kernel(n_sub, x_ref, w1_ref, b_ref, w_ref, o_ref):
    # x_ref : (BM, 2)        f32   raw (x, y) coordinates
    # w1_ref: (2, PAD)       f32   fc1 weight, zero-padded to 128 out lanes
    # b_ref : (6, 1, PAD)    f32   all biases, zero-padded
    # w_ref : (5, PAD, PAD)  bf16  fc2..fc6 weights, zero-padded
    # o_ref : (BM, 3)        f32
    w1 = w1_ref[...]
    b1 = b_ref[0]

    for s in range(n_sub):                       # statically unrolled
        r0 = s * SUB
        x = x_ref[pl.ds(r0, SUB), :]             # (SUB, 2) f32

        # fc1 (K=2): VPU broadcast multiply-adds, skip the MXU entirely.
        h = x[:, 0:1] * w1[0:1, :] + x[:, 1:2] * w1[1:2, :] + b1
        h = jnp.tanh(h)                          # (SUB, PAD) f32

        # fc2..fc6: single-pass bf16 MXU matmuls, f32 accumulate + bias + tanh.
        for li in range(5):
            y = jnp.dot(h.astype(jnp.bfloat16), w_ref[li],
                        preferred_element_type=jnp.float32)
            h = jnp.tanh(y + b_ref[li + 1])

        # Only the 3 valid output lanes go back to HBM.
        o_ref[pl.ds(r0, SUB), :] = h[:, :3].astype(o_ref.dtype)


def init_params(key):
    """Parameters matching the PyTorch module's shapes.

    PyTorch Linear stores W as (out, in); here W is (in, out) so the kernel
    computes y = x @ W + b (same math as x @ W_pt.T + b).
    """
    dims = [(2, 30), (30, 30), (30, 30), (30, 30), (30, 30), (30, 3)]
    params = []
    for din, dout in dims:
        kw, kb, key = jax.random.split(key, 3)
        bound = 1.0 / jnp.sqrt(din)  # nn.Linear default uniform init
        w = jax.random.uniform(kw, (din, dout), jnp.float32, -bound, bound)
        b = jax.random.uniform(kb, (dout,), jnp.float32, -bound, bound)
        params.append((w, b))
    return params


@jax.jit
def navier_stokes_forward(x, params):
    """x: (N, 2) float32 -> (N, 3) float32."""
    n = x.shape[0]
    dims = [(2, 30), (30, 30), (30, 30), (30, 30), (30, 30), (30, 3)]

    # fc1 weight (f32, VPU path) and all biases (f32), zero-padded.
    w1p = jnp.zeros((2, PAD), jnp.float32).at[:, :30].set(params[0][0])
    b_stack = jnp.zeros((6, 1, PAD), jnp.float32)
    for li, ((_, b), (_, dout)) in enumerate(zip(params, dims)):
        b_stack = b_stack.at[li, 0, :dout].set(b)

    # fc2..fc6 weights stacked + zero-padded, stored as bf16 for the MXU.
    w_stack = jnp.zeros((5, PAD, PAD), jnp.bfloat16)
    for li, ((w, _), (din, dout)) in enumerate(zip(params[1:], dims[1:])):
        w_stack = w_stack.at[li, :din, :dout].set(w.astype(jnp.bfloat16))

    # Row tiling: up to MAX_SUBS * SUB rows per grid step.
    n_sub_total = -(-n // SUB)
    subs_per_step = min(MAX_SUBS, n_sub_total)
    bm = subs_per_step * SUB
    n_pad = -(-n // bm) * bm

    xp = x if n_pad == n else jnp.zeros((n_pad, 2), x.dtype).at[:n].set(x)

    out = pl.pallas_call(
        functools.partial(_mlp_kernel, subs_per_step),
        out_shape=jax.ShapeDtypeStruct((n_pad, 3), jnp.float32),
        grid_spec=pltpu.PrefetchScalarGridSpec(
            num_scalar_prefetch=0,
            grid=(n_pad // bm,),
            in_specs=[
                pl.BlockSpec((bm, 2), lambda i: (i, 0)),          # x rows
                pl.BlockSpec((2, PAD), lambda i: (0, 0)),         # fc1 W
                pl.BlockSpec((6, 1, PAD), lambda i: (0, 0, 0)),   # biases
                pl.BlockSpec((5, PAD, PAD), lambda i: (0, 0, 0)), # fc2..fc6 W
            ],
            out_specs=pl.BlockSpec((bm, 3), lambda i: (i, 0)),
        ),
        compiler_params=pltpu.CompilerParams(
            dimension_semantics=("parallel",)),
    )(xp, w1p, b_stack, w_stack)

    return out[:n]


def _reference_forward(x, params):
    h = x
    for w, b in params:
        h = jnp.tanh(h @ w + b)
    return h


if __name__ == "__main__":
    key = jax.random.PRNGKey(0)
    kx, kp = jax.random.split(key)

    # Small input consistent with the module: batch of 256 (x, y) points.
    x = jax.random.uniform(kx, (256, 2), jnp.float32, -1.0, 1.0)
    params = init_params(kp)

    y = navier_stokes_forward(x, params)
    y = jax.block_until_ready(y)

    y_ref = _reference_forward(x, params)
    assert y.shape == (256, 3)
    # bf16 MXU matmuls inside the kernel -> relaxed tolerance vs f32 reference.
    assert jnp.allclose(y, y_ref, atol=3e-2, rtol=1e-2), "mismatch vs reference"

    print("KERNEL_OK")
</pallas_src>

<mosaic_0001>
module attributes {stable_mosaic.version = 11 : i64} {
  func.func @_mlp_kernel(%arg0: i32, %arg1: memref<256x2xf32, #tpu.memory_space<vmem>>, %arg2: memref<2x128xf32, #tpu.memory_space<vmem>>, %arg3: memref<6x1x128xf32, #tpu.memory_space<vmem>>, %arg4: memref<5x128x128xbf16, #tpu.memory_space<vmem>>, %arg5: memref<256x3xf32, #tpu.memory_space<vmem>>) attributes {dimension_semantics = [#tpu.dimension_semantics<parallel>], iteration_bounds = array<i64: 1>, scalar_prefetch = 0 : i64, scratch_operands = 0 : i64, tpu.core_type = #tpu.core_type<tc>, window_params = [{transform_indices = @transform_0, window_bounds = array<i64: 256, 2>}, {pipeline_mode = #tpu.pipeline_mode<synchronous>, transform_indices = @transform_1, window_bounds = array<i64: 2, 128>}, {pipeline_mode = #tpu.pipeline_mode<synchronous>, transform_indices = @transform_2, window_bounds = array<i64: 6, 1, 128>}, {pipeline_mode = #tpu.pipeline_mode<synchronous>, transform_indices = @transform_3, window_bounds = array<i64: 5, 128, 128>}, {transform_indices = @transform_4, window_bounds = array<i64: 256, 3>}]} {
    %c0 = arith.constant 0 : index
    %c0_0 = arith.constant 0 : index
    %0 = vector.load %arg2[%c0, %c0_0] : memref<2x128xf32, #tpu.memory_space<vmem>>, vector<2x128xf32>
    %c0_1 = arith.constant 0 : index
    %c0_2 = arith.constant 0 : index
    %c0_3 = arith.constant 0 : index
    %1 = vector.load %arg3[%c0_1, %c0_2, %c0_3] : memref<6x1x128xf32, #tpu.memory_space<vmem>>, vector<1x1x128xf32>
    %2 = vector.shape_cast %1 : vector<1x1x128xf32> to vector<1x128xf32>
    %c0_4 = arith.constant 0 : index
    %c0_5 = arith.constant 0 : index
    %3 = vector.load %arg1[%c0_4, %c0_5] : memref<256x2xf32, #tpu.memory_space<vmem>>, vector<128x2xf32>
    %4 = vector.extract_strided_slice %3 {offsets = [0, 0], sizes = [128, 1], strides = [1, 1]} : vector<128x2xf32> to vector<128x1xf32>
    %5 = vector.extract_strided_slice %0 {offsets = [0, 0], sizes = [1, 128], strides = [1, 1]} : vector<2x128xf32> to vector<1x128xf32>
    %6 = vector.broadcast %4 : vector<128x1xf32> to vector<128x128xf32>
    %7 = vector.broadcast %5 : vector<1x128xf32> to vector<128x128xf32>
    %8 = arith.mulf %6, %7 : vector<128x128xf32>
    %9 = vector.extract_strided_slice %3 {offsets = [0, 1], sizes = [128, 1], strides = [1, 1]} : vector<128x2xf32> to vector<128x1xf32>
    %10 = vector.extract_strided_slice %0 {offsets = [1, 0], sizes = [1, 128], strides = [1, 1]} : vector<2x128xf32> to vector<1x128xf32>
    %11 = vector.broadcast %9 : vector<128x1xf32> to vector<128x128xf32>
    %12 = vector.broadcast %10 : vector<1x128xf32> to vector<128x128xf32>
    %13 = arith.mulf %11, %12 : vector<128x128xf32>
    %14 = arith.addf %8, %13 : vector<128x128xf32>
    %15 = vector.broadcast %2 : vector<1x128xf32> to vector<128x128xf32>
    %16 = arith.addf %14, %15 : vector<128x128xf32>
    %17 = math.tanh %16 : vector<128x128xf32>
    %18 = arith.truncf %17 : vector<128x128xf32> to vector<128x128xbf16>
    %c0_6 = arith.constant 0 : index
    %c0_7 = arith.constant 0 : index
    %c0_8 = arith.constant 0 : index
    %19 = vector.load %arg4[%c0_6, %c0_7, %c0_8] : memref<5x128x128xbf16, #tpu.memory_space<vmem>>, vector<1x128x128xbf16>
    %20 = vector.shape_cast %19 : vector<1x128x128xbf16> to vector<128x128xbf16>
    %cst = arith.constant dense<0.000000e+00> : vector<128x128xf32>
    %21 = tpu.matmul %18, %20, %cst {dimension_numbers = #tpu.dot_dimension_numbers<[1], [0], [0], [1], [0, 0, 1, 1], [], []>} : vector<128x128xbf16>, vector<128x128xbf16>, vector<128x128xf32> -> vector<128x128xf32>
    %c1 = arith.constant 1 : index
    %c0_9 = arith.constant 0 : index
    %c0_10 = arith.constant 0 : index
    %22 = vector.load %arg3[%c1, %c0_9, %c0_10] : memref<6x1x128xf32, #tpu.memory_space<vmem>>, vector<1x1x128xf32>
    %23 = vector.shape_cast %22 : vector<1x1x128xf32> to vector<1x128xf32>
    %24 = vector.broadcast %23 : vector<1x128xf32> to vector<128x128xf32>
    %25 = arith.addf %21, %24 : vector<128x128xf32>
    %26 = math.tanh %25 : vector<128x128xf32>
    %27 = arith.truncf %26 : vector<128x128xf32> to vector<128x128xbf16>
    %c1_11 = arith.constant 1 : index
    %c0_12 = arith.constant 0 : index
    %c0_13 = arith.constant 0 : index
    %28 = vector.load %arg4[%c1_11, %c0_12, %c0_13] : memref<5x128x128xbf16, #tpu.memory_space<vmem>>, vector<1x128x128xbf16>
    %29 = vector.shape_cast %28 : vector<1x128x128xbf16> to vector<128x128xbf16>
    %cst_14 = arith.constant dense<0.000000e+00> : vector<128x128xf32>
    %30 = tpu.matmul %27, %29, %cst_14 {dimension_numbers = #tpu.dot_dimension_numbers<[1], [0], [0], [1], [0, 0, 1, 1], [], []>} : vector<128x128xbf16>, vector<128x128xbf16>, vector<128x128xf32> -> vector<128x128xf32>
    %c2 = arith.constant 2 : index
    %c0_15 = arith.constant 0 : index
    %c0_16 = arith.constant 0 : index
    %31 = vector.load %arg3[%c2, %c0_15, %c0_16] : memref<6x1x128xf32, #tpu.memory_space<vmem>>, vector<1x1x128xf32>
    %32 = vector.shape_cast %31 : vector<1x1x128xf32> to vector<1x128xf32>
    %33 = vector.broadcast %32 : vector<1x128xf32> to vector<128x128xf32>
    %34 = arith.addf %30, %33 : vector<128x128xf32>
    %35 = math.tanh %34 : vector<128x128xf32>
    %36 = arith.truncf %35 : vector<128x128xf32> to vector<128x128xbf16>
    %c2_17 = arith.constant 2 : index
    %c0_18 = arith.constant 0 : index
    %c0_19 = arith.constant 0 : index
    %37 = vector.load %arg4[%c2_17, %c0_18, %c0_19] : memref<5x128x128xbf16, #tpu.memory_space<vmem>>, vector<1x128x128xbf16>
    %38 = vector.shape_cast %37 : vector<1x128x128xbf16> to vector<128x128xbf16>
    %cst_20 = arith.constant dense<0.000000e+00> : vector<128x128xf32>
    %39 = tpu.matmul %36, %38, %cst_20 {dimension_numbers = #tpu.dot_dimension_numbers<[1], [0], [0], [1], [0, 0, 1, 1], [], []>} : vector<128x128xbf16>, vector<128x128xbf16>, vector<128x128xf32> -> vector<128x128xf32>
    %c3 = arith.constant 3 : index
    %c0_21 = arith.constant 0 : index
    %c0_22 = arith.constant 0 : index
    %40 = vector.load %arg3[%c3, %c0_21, %c0_22] : memref<6x1x128xf32, #tpu.memory_space<vmem>>, vector<1x1x128xf32>
    %41 = vector.shape_cast %40 : vector<1x1x128xf32> to vector<1x128xf32>
    %42 = vector.broadcast %41 : vector<1x128xf32> to vector<128x128xf32>
    %43 = arith.addf %39, %42 : vector<128x128xf32>
    %44 = math.tanh %43 : vector<128x128xf32>
    %45 = arith.truncf %44 : vector<128x128xf32> to vector<128x128xbf16>
    %c3_23 = arith.constant 3 : index
    %c0_24 = arith.constant 0 : index
    %c0_25 = arith.constant 0 : index
    %46 = vector.load %arg4[%c3_23, %c0_24, %c0_25] : memref<5x128x128xbf16, #tpu.memory_space<vmem>>, vector<1x128x128xbf16>
    %47 = vector.shape_cast %46 : vector<1x128x128xbf16> to vector<128x128xbf16>
    %cst_26 = arith.constant dense<0.000000e+00> : vector<128x128xf32>
    %48 = tpu.matmul %45, %47, %cst_26 {dimension_numbers = #tpu.dot_dimension_numbers<[1], [0], [0], [1], [0, 0, 1, 1], [], []>} : vector<128x128xbf16>, vector<128x128xbf16>, vector<128x128xf32> -> vector<128x128xf32>
    %c4 = arith.constant 4 : index
    %c0_27 = arith.constant 0 : index
    %c0_28 = arith.constant 0 : index
    %49 = vector.load %arg3[%c4, %c0_27, %c0_28] : memref<6x1x128xf32, #tpu.memory_space<vmem>>, vector<1x1x128xf32>
    %50 = vector.shape_cast %49 : vector<1x1x128xf32> to vector<1x128xf32>
    %51 = vector.broadcast %50 : vector<1x128xf32> to vector<128x128xf32>
    %52 = arith.addf %48, %51 : vector<128x128xf32>
    %53 = math.tanh %52 : vector<128x128xf32>
    %54 = arith.truncf %53 : vector<128x128xf32> to vector<128x128xbf16>
    %c4_29 = arith.constant 4 : index
    %c0_30 = arith.constant 0 : index
    %c0_31 = arith.constant 0 : index
    %55 = vector.load %arg4[%c4_29, %c0_30, %c0_31] : memref<5x128x128xbf16, #tpu.memory_space<vmem>>, vector<1x128x128xbf16>
    %56 = vector.shape_cast %55 : vector<1x128x128xbf16> to vector<128x128xbf16>
    %cst_32 = arith.constant dense<0.000000e+00> : vector<128x128xf32>
    %57 = tpu.matmul %54, %56, %cst_32 {dimension_numbers = #tpu.dot_dimension_numbers<[1], [0], [0], [1], [0, 0, 1, 1], [], []>} : vector<128x128xbf16>, vector<128x128xbf16>, vector<128x128xf32> -> vector<128x128xf32>
    %c5 = arith.constant 5 : index
    %c0_33 = arith.constant 0 : index
    %c0_34 = arith.constant 0 : index
    %58 = vector.load %arg3[%c5, %c0_33, %c0_34] : memref<6x1x128xf32, #tpu.memory_space<vmem>>, vector<1x1x128xf32>
    %59 = vector.shape_cast %58 : vector<1x1x128xf32> to vector<1x128xf32>
    %60 = vector.broadcast %59 : vector<1x128xf32> to vector<128x128xf32>
    %61 = arith.addf %57, %60 : vector<128x128xf32>
    %62 = math.tanh %61 : vector<128x128xf32>
    %63 = vector.extract_strided_slice %62 {offsets = [0, 0], sizes = [128, 3], strides = [1, 1]} : vector<128x128xf32> to vector<128x3xf32>
    %c0_35 = arith.constant 0 : index
    %c0_36 = arith.constant 0 : index
    %64 = vector.load %arg5[%c0_35, %c0_36] : memref<256x3xf32, #tpu.memory_space<vmem>>, vector<128x3xf32>
    tpu.vector_store %arg5[%c0_35, %c0_36], %63 {strides = array<i32>} : memref<256x3xf32, #tpu.memory_space<vmem>>, vector<128x3xf32>,
    %c128 = arith.constant 128 : index
    %c0_37 = arith.constant 0 : index
    %65 = vector.load %arg1[%c128, %c0_37] : memref<256x2xf32, #tpu.memory_space<vmem>>, vector<128x2xf32>
    %66 = vector.extract_strided_slice %65 {offsets = [0, 0], sizes = [128, 1], strides = [1, 1]} : vector<128x2xf32> to vector<128x1xf32>
    %67 = vector.extract_strided_slice %0 {offsets = [0, 0], sizes = [1, 128], strides = [1, 1]} : vector<2x128xf32> to vector<1x128xf32>
    %68 = vector.broadcast %66 : vector<128x1xf32> to vector<128x128xf32>
    %69 = vector.broadcast %67 : vector<1x128xf32> to vector<128x128xf32>
    %70 = arith.mulf %68, %69 : vector<128x128xf32>
    %71 = vector.extract_strided_slice %65 {offsets = [0, 1], sizes = [128, 1], strides = [1, 1]} : vector<128x2xf32> to vector<128x1xf32>
    %72 = vector.extract_strided_slice %0 {offsets = [1, 0], sizes = [1, 128], strides = [1, 1]} : vector<2x128xf32> to vector<1x128xf32>
    %73 = vector.broadcast %71 : vector<128x1xf32> to vector<128x128xf32>
    %74 = vector.broadcast %72 : vector<1x128xf32> to vector<128x128xf32>
    %75 = arith.mulf %73, %74 : vector<128x128xf32>
    %76 = arith.addf %70, %75 : vector<128x128xf32>
    %77 = vector.broadcast %2 : vector<1x128xf32> to vector<128x128xf32>
    %78 = arith.addf %76, %77 : vector<128x128xf32>
    %79 = math.tanh %78 : vector<128x128xf32>
    %80 = arith.truncf %79 : vector<128x128xf32> to vector<128x128xbf16>
    %c0_38 = arith.constant 0 : index
    %c0_39 = arith.constant 0 : index
    %c0_40 = arith.constant 0 : index
    %81 = vector.load %arg4[%c0_38, %c0_39, %c0_40] : memref<5x128x128xbf16, #tpu.memory_space<vmem>>, vector<1x128x128xbf16>
    %82 = vector.shape_cast %81 : vector<1x128x128xbf16> to vector<128x128xbf16>
    %cst_41 = arith.constant dense<0.000000e+00> : vector<128x128xf32>
    %83 = tpu.matmul %80, %82, %cst_41 {dimension_numbers = #tpu.dot_dimension_numbers<[1], [0], [0], [1], [0, 0, 1, 1], [], []>} : vector<128x128xbf16>, vector<128x128xbf16>, vector<128x128xf32> -> vector<128x128xf32>
    %c1_42 = arith.constant 1 : index
    %c0_43 = arith.constant 0 : index
    %c0_44 = arith.constant 0 : index
    %84 = vector.load %arg3[%c1_42, %c0_43, %c0_44] : memref<6x1x128xf32, #tpu.memory_space<vmem>>, vector<1x1x128xf32>
    %85 = vector.shape_cast %84 : vector<1x1x128xf32> to vector<1x128xf32>
    %86 = vector.broadcast %85 : vector<1x128xf32> to vector<128x128xf32>
    %87 = arith.addf %83, %86 : vector<128x128xf32>
    %88 = math.tanh %87 : vector<128x128xf32>
    %89 = arith.truncf %88 : vector<128x128xf32> to vector<128x128xbf16>
    %c1_45 = arith.constant 1 : index
    %c0_46 = arith.constant 0 : index
    %c0_47 = arith.constant 0 : index
    %90 = vector.load %arg4[%c1_45, %c0_46, %c0_47] : memref<5x128x128xbf16, #tpu.memory_space<vmem>>, vector<1x128x128xbf16>
    %91 = vector.shape_cast %90 : vector<1x128x128xbf16> to vector<128x128xbf16>
    %cst_48 = arith.constant dense<0.000000e+00> : vector<128x128xf32>
    %92 = tpu.matmul %89, %91, %cst_48 {dimension_numbers = #tpu.dot_dimension_numbers<[1], [0], [0], [1], [0, 0, 1, 1], [], []>} : vector<128x128xbf16>, vector<128x128xbf16>, vector<128x128xf32> -> vector<128x128xf32>
    %c2_49 = arith.constant 2 : index
    %c0_50 = arith.constant 0 : index
    %c0_51 = arith.constant 0 : index
    %93 = vector.load %arg3[%c2_49, %c0_50, %c0_51] : memref<6x1x128xf32, #tpu.memory_space<vmem>>, vector<1x1x128xf32>
    %94 = vector.shape_cast %93 : vector<1x1x128xf32> to vector<1x128xf32>
    %95 = vector.broadcast %94 : vector<1x128xf32> to vector<128x128xf32>
    %96 = arith.addf %92, %95 : vector<128x128xf32>
    %97 = math.tanh %96 : vector<128x128xf32>
    %98 = arith.truncf %97 : vector<128x128xf32> to vector<128x128xbf16>
    %c2_52 = arith.constant 2 : index
    %c0_53 = arith.constant 0 : index
    %c0_54 = arith.constant 0 : index
    %99 = vector.load %arg4[%c2_52, %c0_53, %c0_54] : memref<5x128x128xbf16, #tpu.memory_space<vmem>>, vector<1x128x128xbf16>
    %100 = vector.shape_cast %99 : vector<1x128x128xbf16> to vector<128x128xbf16>
    %cst_55 = arith.constant dense<0.000000e+00> : vector<128x128xf32>
    %101 = tpu.matmul %98, %100, %cst_55 {dimension_numbers = #tpu.dot_dimension_numbers<[1], [0], [0], [1], [0, 0, 1, 1], [], []>} : vector<128x128xbf16>, vector<128x128xbf16>, vector<128x128xf32> -> vector<128x128xf32>
    %c3_56 = arith.constant 3 : index
    %c0_57 = arith.constant 0 : index
    %c0_58 = arith.constant 0 : index
    %102 = vector.load %arg3[%c3_56, %c0_57, %c0_58] : memref<6x1x128xf32, #tpu.memory_space<vmem>>, vector<1x1x128xf32>
    %103 = vector.shape_cast %102 : vector<1x1x128xf32> to vector<1x128xf32>
    %104 = vector.broadcast %103 : vector<1x128xf32> to vector<128x128xf32>
    %105 = arith.addf %101, %104 : vector<128x128xf32>
    %106 = math.tanh %105 : vector<128x128xf32>
    %107 = arith.truncf %106 : vector<128x128xf32> to vector<128x128xbf16>
    %c3_59 = arith.constant 3 : index
    %c0_60 = arith.constant 0 : index
    %c0_61 = arith.constant 0 : index
    %108 = vector.load %arg4[%c3_59, %c0_60, %c0_61] : memref<5x128x128xbf16, #tpu.memory_space<vmem>>, vector<1x128x128xbf16>
    %109 = vector.shape_cast %108 : vector<1x128x128xbf16> to vector<128x128xbf16>
    %cst_62 = arith.constant dense<0.000000e+00> : vector<128x128xf32>
    %110 = tpu.matmul %107, %109, %cst_62 {dimension_numbers = #tpu.dot_dimension_numbers<[1], [0], [0], [1], [0, 0, 1, 1], [], []>} : vector<128x128xbf16>, vector<128x128xbf16>, vector<128x128xf32> -> vector<128x128xf32>
    %c4_63 = arith.constant 4 : index
    %c0_64 = arith.constant 0 : index
    %c0_65 = arith.constant 0 : index
    %111 = vector.load %arg3[%c4_63, %c0_64, %c0_65] : memref<6x1x128xf32, #tpu.memory_space<vmem>>, vector<1x1x128xf32>
    %112 = vector.shape_cast %111 : vector<1x1x128xf32> to vector<1x128xf32>
    %113 = vector.broadcast %112 : vector<1x128xf32> to vector<128x128xf32>
    %114 = arith.addf %110, %113 : vector<128x128xf32>
    %115 = math.tanh %114 : vector<128x128xf32>
    %116 = arith.truncf %115 : vector<128x128xf32> to vector<128x128xbf16>
    %c4_66 = arith.constant 4 : index
    %c0_67 = arith.constant 0 : index
    %c0_68 = arith.constant 0 : index
    %117 = vector.load %arg4[%c4_66, %c0_67, %c0_68] : memref<5x128x128xbf16, #tpu.memory_space<vmem>>, vector<1x128x128xbf16>
    %118 = vector.shape_cast %117 : vector<1x128x128xbf16> to vector<128x128xbf16>
    %cst_69 = arith.constant dense<0.000000e+00> : vector<128x128xf32>
    %119 = tpu.matmul %116, %118, %cst_69 {dimension_numbers = #tpu.dot_dimension_numbers<[1], [0], [0], [1], [0, 0, 1, 1], [], []>} : vector<128x128xbf16>, vector<128x128xbf16>, vector<128x128xf32> -> vector<128x128xf32>
    %c5_70 = arith.constant 5 : index
    %c0_71 = arith.constant 0 : index
    %c0_72 = arith.constant 0 : index
    %120 = vector.load %arg3[%c5_70, %c0_71, %c0_72] : memref<6x1x128xf32, #tpu.memory_space<vmem>>, vector<1x1x128xf32>
    %121 = vector.shape_cast %120 : vector<1x1x128xf32> to vector<1x128xf32>
    %122 = vector.broadcast %121 : vector<1x128xf32> to vector<128x128xf32>
    %123 = arith.addf %119, %122 : vector<128x128xf32>
    %124 = math.tanh %123 : vector<128x128xf32>
    %125 = vector.extract_strided_slice %124 {offsets = [0, 0], sizes = [128, 3], strides = [1, 1]} : vector<128x128xf32> to vector<128x3xf32>
    %c128_73 = arith.constant 128 : index
    %c0_74 = arith.constant 0 : index
    %126 = vector.load %arg5[%c128_73, %c0_74] : memref<256x3xf32, #tpu.memory_space<vmem>>, vector<128x3xf32>
    tpu.vector_store %arg5[%c128_73, %c0_74], %125 {strides = array<i32>} : memref<256x3xf32, #tpu.memory_space<vmem>>, vector<128x3xf32>,
    return
  }
  func.func @transform_0(%arg0: i32) -> (i32, i32) {
    %c0_i32 = arith.constant 0 : i32
    %c0_i32_0 = arith.constant 0 : i32
    return %arg0, %c0_i32 : i32, i32
  }
  func.func @transform_1(%arg0: i32) -> (i32, i32) {
    %c0_i32 = arith.constant 0 : i32
    %c0_i32_0 = arith.constant 0 : i32
    %c0_i32_1 = arith.constant 0 : i32
    return %c0_i32, %c0_i32_0 : i32, i32
  }
  func.func @transform_2(%arg0: i32) -> (i32, i32, i32) {
    %c0_i32 = arith.constant 0 : i32
    %c0_i32_0 = arith.constant 0 : i32
    %c0_i32_1 = arith.constant 0 : i32
    %c0_i32_2 = arith.constant 0 : i32
    return %c0_i32, %c0_i32_0, %c0_i32_1 : i32, i32, i32
  }
  func.func @transform_3(%arg0: i32) -> (i32, i32, i32) {
    %c0_i32 = arith.constant 0 : i32
    %c0_i32_0 = arith.constant 0 : i32
    %c0_i32_1 = arith.constant 0 : i32
    %c0_i32_2 = arith.constant 0 : i32
    return %c0_i32, %c0_i32_0, %c0_i32_1 : i32, i32, i32
  }
  func.func @transform_4(%arg0: i32) -> (i32, i32) {
    %c0_i32 = arith.constant 0 : i32
    %c0_i32_0 = arith.constant 0 : i32
    return %arg0, %c0_i32 : i32, i32
  }
}

</mosaic_0001>

<llo_original>
// kernel: navier_stokes_forward.1
$region0: #{navier_stokes_forward.1}
  #allocation0 [shape = 'u32[]', space=smem, size = 0x4, offset = 0x4, fixed_abs, tag = 'smem constant byte address 0x4 - core index']
  #allocation1 [shape = 'u32[144,128]{1,0:T(1,128)}', space=vmem, size = 0x12000, scoped, tag = 'internal scratch']
  %s0 = inlined_call_operand.vmem [shape: f32[256,2], index: 0, kind: input, shape index: {}]
  %s1 = inlined_call_operand.vmem [shape: f32[2,128], index: 1, kind: input, shape index: {}]
  %s2 = inlined_call_operand.vmem [shape: f32[6,1,128], index: 2, kind: input, shape index: {}]
  %s3 = inlined_call_operand.vmem [shape: bf16[5,128,128], index: 3, kind: input, shape index: {}]
  %s4 = inlined_call_operand.vmem [shape: f32[256,3], index: 4, kind: output, shape index: {}]
  %s5 = sld [smem:[#allocation0]]
  $region26: #{navier_stokes_forward.1} parent=0
    _
  %s7 = ssub.s32 1, %s5
  %s8 = scalar_select 0, %s7, %s5
  // Predicated region
  $region2: #{navier_stokes_forward.1} parent=0 // pred_check
    _
  $region3: #{navier_stokes_forward.1} parent=0 // pred_check_branch
    %10 = sbr.rel (0) target = $region5
  $region4: #{navier_stokes_forward.1} parent=0 // pred_region
    _
  $region5: #{navier_stokes_forward.1} parent=0 // pred_fallthru
    _
  // Predicated region
  $region6: #{navier_stokes_forward.1} parent=0 // pred_check
    _
  $region7: #{navier_stokes_forward.1} parent=0 // pred_check_branch
    %12 = sbr.rel (0) target = $region9
  $region8: #{navier_stokes_forward.1} parent=0 // pred_region
    _
  $region9: #{navier_stokes_forward.1} parent=0 // pred_fallthru
    _
  // Predicated region
  $region10: #{navier_stokes_forward.1} parent=0 // pred_check
    _
  $region11: #{navier_stokes_forward.1} parent=0 // pred_check_branch
    %14 = sbr.rel (0) target = $region13
  $region12: #{navier_stokes_forward.1} parent=0 // pred_region
    _
  $region13: #{navier_stokes_forward.1} parent=0 // pred_fallthru
    _
  // Predicated region
  $region14: #{navier_stokes_forward.1} parent=0 // pred_check
    _
  $region15: #{navier_stokes_forward.1} parent=0 // pred_check_branch
    %16 = sbr.rel (0) target = $region17
  $region16: #{navier_stokes_forward.1} parent=0 // pred_region
    _
  $region17: #{navier_stokes_forward.1} parent=0 // pred_fallthru
    _
  %v18 = vld [vmem:[%s1] sm:$0x3]
  %v19 = vld [vmem:[%s2] sm:$0x1]
  %v20 = vld [vmem:[%s0] sm:$0xff]
  %v21 = vld [vmem:[%s0 + $0x8] sm:$0xff]
  %v22 = vld [vmem:[%s0 + $0x10] sm:$0xff]
  %v23 = vld [vmem:[%s0 + $0x18] sm:$0xff]
  %v24 = vld [vmem:[%s0 + $0x20] sm:$0xff]
  %v25 = vld [vmem:[%s0 + $0x28] sm:$0xff]
  %v26 = vld [vmem:[%s0 + $0x30] sm:$0xff]
  %v27 = vld [vmem:[%s0 + $0x38] sm:$0xff]
  %v28 = vld [vmem:[%s0 + $0x40] sm:$0xff]
  %v29 = vld [vmem:[%s0 + $0x48] sm:$0xff]
  %v30 = vld [vmem:[%s0 + $0x50] sm:$0xff]
  %v31 = vld [vmem:[%s0 + $0x58] sm:$0xff]
  %v32 = vld [vmem:[%s0 + $0x60] sm:$0xff]
  %v33 = vld [vmem:[%s0 + $0x68] sm:$0xff]
  %v34 = vld [vmem:[%s0 + $0x70] sm:$0xff]
  %v35 = vld [vmem:[%s0 + $0x78] sm:$0xff]
  %37 = vset.pattern.permute.xlu0 0
  %38 = vperm.xlu0 %37, %v20
  %v39 = vpop.permute.xlu0 %38
  %42 = vset.pattern.permute.xlu0 0
  %43 = vperm.xlu0 %42, %v21
  %v44 = vpop.permute.xlu0 %43
  %47 = vset.pattern.permute.xlu0 0
  %48 = vperm.xlu0 %47, %v22
  %v49 = vpop.permute.xlu0 %48
  %52 = vset.pattern.permute.xlu0 0
  %53 = vperm.xlu0 %52, %v23
  %v54 = vpop.permute.xlu0 %53
  %57 = vset.pattern.permute.xlu0 0
  %58 = vperm.xlu0 %57, %v24
  %v59 = vpop.permute.xlu0 %58
  %62 = vset.pattern.permute.xlu0 0
  %63 = vperm.xlu0 %62, %v25
  %v64 = vpop.permute.xlu0 %63
  %67 = vset.pattern.permute.xlu0 0
  %68 = vperm.xlu0 %67, %v26
  %v69 = vpop.permute.xlu0 %68
  %72 = vset.pattern.permute.xlu0 0
  %73 = vperm.xlu0 %72, %v27
  %v74 = vpop.permute.xlu0 %73
  %77 = vset.pattern.permute.xlu0 0
  %78 = vperm.xlu0 %77, %v28
  %v79 = vpop.permute.xlu0 %78
  %82 = vset.pattern.permute.xlu0 0
  %83 = vperm.xlu0 %82, %v29
  %v84 = vpop.permute.xlu0 %83
  %87 = vset.pattern.permute.xlu0 0
  %88 = vperm.xlu0 %87, %v30
  %v89 = vpop.permute.xlu0 %88
  %92 = vset.pattern.permute.xlu0 0
  %93 = vperm.xlu0 %92, %v31
  %v94 = vpop.permute.xlu0 %93
  %97 = vset.pattern.permute.xlu0 0
  %98 = vperm.xlu0 %97, %v32
  %v99 = vpop.permute.xlu0 %98
  %102 = vset.pattern.permute.xlu0 0
  %103 = vperm.xlu0 %102, %v33
  %v104 = vpop.permute.xlu0 %103
  %107 = vset.pattern.permute.xlu0 0
  %108 = vperm.xlu0 %107, %v34
  %v109 = vpop.permute.xlu0 %108
  %112 = vset.pattern.permute.xlu0 0
  %113 = vperm.xlu0 %112, %v35
  %v114 = vpop.permute.xlu0 %113
  %v116 = vlaneseq
  %v117 = vshrl.u32 %v116, 7
  %v118 = vsub.s32 0, %v117
  %v119 = vrot.slane %v18, %v118
  %v120 = vmul.f32 %v39, %v119
  %v121 = vmul.f32 %v44, %v119
  %v122 = vmul.f32 %v49, %v119
  %v123 = vmul.f32 %v54, %v119
  %v124 = vmul.f32 %v59, %v119
  %v125 = vmul.f32 %v64, %v119
  %v126 = vmul.f32 %v69, %v119
  %v127 = vmul.f32 %v74, %v119
  %v128 = vmul.f32 %v79, %v119
  %v129 = vmul.f32 %v84, %v119
  %v130 = vmul.f32 %v89, %v119
  %v131 = vmul.f32 %v94, %v119
  %v132 = vmul.f32 %v99, %v119
  %v133 = vmul.f32 %v104, %v119
  %v134 = vmul.f32 %v109, %v119
  %v135 = vmul.f32 %v114, %v119
  %136 = vset.pattern.permute.xlu0 1
  %137 = vperm.xlu0 %136, %v20
  %v138 = vpop.permute.xlu0 %137
  %140 = vset.pattern.permute.xlu0 1
  %141 = vperm.xlu0 %140, %v21
  %v142 = vpop.permute.xlu0 %141
  %144 = vset.pattern.permute.xlu0 1
  %145 = vperm.xlu0 %144, %v22
  %v146 = vpop.permute.xlu0 %145
  %148 = vset.pattern.permute.xlu0 1
  %149 = vperm.xlu0 %148, %v23
  %v150 = vpop.permute.xlu0 %149
  %152 = vset.pattern.permute.xlu0 1
  %153 = vperm.xlu0 %152, %v24
  %v154 = vpop.permute.xlu0 %153
  %156 = vset.pattern.permute.xlu0 1
  %157 = vperm.xlu0 %156, %v25
  %v158 = vpop.permute.xlu0 %157
  %160 = vset.pattern.permute.xlu0 1
  %161 = vperm.xlu0 %160, %v26
  %v162 = vpop.permute.xlu0 %161
  %164 = vset.pattern.permute.xlu0 1
  %165 = vperm.xlu0 %164, %v27
  %v166 = vpop.permute.xlu0 %165
  %168 = vset.pattern.permute.xlu0 1
  %169 = vperm.xlu0 %168, %v28
  %v170 = vpop.permute.xlu0 %169
  %172 = vset.pattern.permute.xlu0 1
  %173 = vperm.xlu0 %172, %v29
  %v174 = vpop.permute.xlu0 %173
  %176 = vset.pattern.permute.xlu0 1
  %177 = vperm.xlu0 %176, %v30
  %v178 = vpop.permute.xlu0 %177
  %180 = vset.pattern.permute.xlu0 1
  %181 = vperm.xlu0 %180, %v31
  %v182 = vpop.permute.xlu0 %181
  %184 = vset.pattern.permute.xlu0 1
  %185 = vperm.xlu0 %184, %v32
  %v186 = vpop.permute.xlu0 %185
  %188 = vset.pattern.permute.xlu0 1
  %189 = vperm.xlu0 %188, %v33
  %v190 = vpop.permute.xlu0 %189
  %192 = vset.pattern.permute.xlu0 1
  %193 = vperm.xlu0 %192, %v34
  %v194 = vpop.permute.xlu0 %193
  %196 = vset.pattern.permute.xlu0 1
  %197 = vperm.xlu0 %196, %v35
  %v198 = vpop.permute.xlu0 %197
  %v200 = vlaneseq
  %v201 = vshrl.u32 %v200, 7
  %v202 = vsub.s32 1, %v201
  %v203 = vrot.slane %v18, %v202
  %v204 = vmul.f32 %v138, %v203
  %v205 = vmul.f32 %v142, %v203
  %v206 = vmul.f32 %v146, %v203
  %v207 = vmul.f32 %v150, %v203
  %v208 = vmul.f32 %v154, %v203
  %v209 = vmul.f32 %v158, %v203
  %v210 = vmul.f32 %v162, %v203
  %v211 = vmul.f32 %v166, %v203
  %v212 = vmul.f32 %v170, %v203
  %v213 = vmul.f32 %v174, %v203
  %v214 = vmul.f32 %v178, %v203
  %v215 = vmul.f32 %v182, %v203
  %v216 = vmul.f32 %v186, %v203
  %v217 = vmul.f32 %v190, %v203
  %v218 = vmul.f32 %v194, %v203
  %v219 = vmul.f32 %v198, %v203
  %v220 = vadd.f32 %v120, %v204
  %v221 = vadd.f32 %v121, %v205
  %v222 = vadd.f32 %v122, %v206
  %v223 = vadd.f32 %v123, %v207
  %v224 = vadd.f32 %v124, %v208
  %v225 = vadd.f32 %v125, %v209
  %v226 = vadd.f32 %v126, %v210
  %v227 = vadd.f32 %v127, %v211
  %v228 = vadd.f32 %v128, %v212
  %v229 = vadd.f32 %v129, %v213
  %v230 = vadd.f32 %v130, %v214
  %v231 = vadd.f32 %v131, %v215
  %v232 = vadd.f32 %v132, %v216
  %v233 = vadd.f32 %v133, %v217
  %v234 = vadd.f32 %v134, %v218
  %v235 = vadd.f32 %v135, %v219
  %v237 = vlaneseq
  %v238 = vshrl.u32 %v237, 7
  %v239 = vsub.s32 0, %v238
  %v240 = vrot.slane %v19, %v239
  %v242 = vadd.f32 %v220, %v240
  %v243 = vadd.f32 %v221, %v240
  %v244 = vadd.f32 %v222, %v240
  %v245 = vadd.f32 %v223, %v240
  %v246 = vadd.f32 %v224, %v240
  %v247 = vadd.f32 %v225, %v240
  %v248 = vadd.f32 %v226, %v240
  %v249 = vadd.f32 %v227, %v240
  %v250 = vadd.f32 %v228, %v240
  %v251 = vadd.f32 %v229, %v240
  %v252 = vadd.f32 %v230, %v240
  %v253 = vadd.f32 %v231, %v240
  %v254 = vadd.f32 %v232, %v240
  %v255 = vadd.f32 %v233, %v240
  %v256 = vadd.f32 %v234, %v240
  %v257 = vadd.f32 %v235, %v240
  %v258 = vtanh.pop %v242
  %v259 = vtanh.pop %v243
  %v260 = vtanh.pop %v244
  %v261 = vtanh.pop %v245
  %v262 = vtanh.pop %v246
  %v263 = vtanh.pop %v247
  %v264 = vtanh.pop %v248
  %v265 = vtanh.pop %v249
  %v266 = vtanh.pop %v250
  %v267 = vtanh.pop %v251
  %v268 = vtanh.pop %v252
  %v269 = vtanh.pop %v253
  %v270 = vtanh.pop %v254
  %v271 = vtanh.pop %v255
  %v272 = vtanh.pop %v256
  %v273 = vtanh.pop %v257
  %v274 = vpack.c.bf16 %v259, %v258
  %v275 = vpack.c.bf16 %v261, %v260
  %v276 = vpack.c.bf16 %v263, %v262
  %v277 = vpack.c.bf16 %v265, %v264
  %v278 = vpack.c.bf16 %v267, %v266
  %v279 = vpack.c.bf16 %v269, %v268
  %v280 = vpack.c.bf16 %v271, %v270
  %v281 = vpack.c.bf16 %v273, %v272
  %v282 = vld [vmem:[%s3] sm:$0xf]
  %v283 = vld [vmem:[%s3 + $0x4] sm:$0xf]
  %v284 = vld [vmem:[%s3 + $0x8] sm:$0xf]
  %v285 = vld [vmem:[%s3 + $0xc] sm:$0xf]
  %v286 = vld [vmem:[%s3 + $0x10] sm:$0xf]
  %v287 = vld [vmem:[%s3 + $0x14] sm:$0xf]
  %v288 = vld [vmem:[%s3 + $0x18] sm:$0xf]
  %v289 = vld [vmem:[%s3 + $0x1c] sm:$0xf]
  %v290 = vld [vmem:[%s3 + $0x20] sm:$0xf]
  %v291 = vld [vmem:[%s3 + $0x24] sm:$0xf]
  %v292 = vld [vmem:[%s3 + $0x28] sm:$0xf]
  %v293 = vld [vmem:[%s3 + $0x2c] sm:$0xf]
  %v294 = vld [vmem:[%s3 + $0x30] sm:$0xf]
  %v295 = vld [vmem:[%s3 + $0x34] sm:$0xf]
  %v296 = vld [vmem:[%s3 + $0x38] sm:$0xf]
  %v297 = vld [vmem:[%s3 + $0x3c] sm:$0xf]
  %s298 = scalar_lea.vmem %s2, 1
  %v299 = vld [vmem:[%s298] sm:$0x1]
  %v301 = vlaneseq
  %v302 = vshrl.u32 %v301, 7
  %v303 = vsub.s32 0, %v302
  %v304 = vrot.slane %v299, %v303
  %v322 = vunpack.c.l.b16 %v282
  %v323 = vunpack.c.l.b16 %v283
  %v324 = vunpack.c.l.b16 %v284
  %v325 = vunpack.c.l.b16 %v285
  %v326 = vunpack.c.l.b16 %v286
  %v327 = vunpack.c.l.b16 %v287
  %v328 = vunpack.c.l.b16 %v288
  %v329 = vunpack.c.l.b16 %v289
  %v330 = vunpack.c.l.b16 %v290
  %v331 = vunpack.c.l.b16 %v291
  %v332 = vunpack.c.l.b16 %v292
  %v333 = vunpack.c.l.b16 %v293
  %v334 = vunpack.c.l.b16 %v294
  %v335 = vunpack.c.l.b16 %v295
  %v336 = vunpack.c.l.b16 %v296
  %v337 = vunpack.c.l.b16 %v297
  %v338 = vpack.c.b16 %v323, %v322
  %v339 = vpack.c.b16 %v325, %v324
  %v340 = vpack.c.b16 %v327, %v326
  %v341 = vpack.c.b16 %v329, %v328
  %v342 = vpack.c.b16 %v331, %v330
  %v343 = vpack.c.b16 %v333, %v332
  %v344 = vpack.c.b16 %v335, %v334
  %v345 = vpack.c.b16 %v337, %v336
  %354 = vmatprep.subr.bf16.mxu0 0
  %355 = vmatpush1.bf16.msra.mxu0 %v338
  %356 = vmatprep.subr.bf16.mxu0 0
  %357 = vmatpush1.bf16.msra.mxu0 %v339
  %358 = vmatprep.subr.bf16.mxu0 0
  %359 = vmatpush1.bf16.msra.mxu0 %v340
  %360 = vmatprep.subr.bf16.mxu0 0
  %361 = vmatpush1.bf16.msra.mxu0 %v341
  %362 = vmatprep.subr.bf16.mxu0 0
  %363 = vmatpush1.bf16.msra.mxu0 %v342
  %364 = vmatprep.subr.bf16.mxu0 0
  %365 = vmatpush1.bf16.msra.mxu0 %v343
  %366 = vmatprep.subr.bf16.mxu0 0
  %367 = vmatpush1.bf16.msra.mxu0 %v344
  %368 = vmatprep.subr.bf16.mxu0 0
  %369 = vmatpush1.bf16.msra.mxu0 %v345
  %370 = vmatprep.subr.bf16.mxu0 0
  %371 = vmatpush1.bf16.msra.mxu0 0
  %372 = vmatprep.subr.bf16.mxu0 0
  %373 = vmatpush1.bf16.msra.mxu0 0
  %374 = vmatprep.subr.bf16.mxu0 0
  %375 = vmatpush1.bf16.msra.mxu0 0
  %376 = vmatprep.subr.bf16.mxu0 0
  %377 = vmatpush1.bf16.msra.mxu0 0
  %378 = vmatprep.subr.bf16.mxu0 0
  %379 = vmatpush1.bf16.msra.mxu0 0
  %380 = vmatprep.subr.bf16.mxu0 0
  %381 = vmatpush1.bf16.msra.mxu0 0
  %382 = vmatprep.subr.bf16.mxu0 0
  %383 = vmatpush1.bf16.msra.mxu0 0
  %384 = vmatprep.subr.bf16.mxu0 0
  %385 = vmatpush1.bf16.msra.mxu0 0
  %386 = vmatprep.mubr.bf16.mxu0 0
  %387 = vmatmul.mubr.bf16.gmra.mrb[0].mxu0 %v274
  %v388 = vpop.f32.mrb[0].mxu0
  %v389 = vadd.f32 %v304, %v388
  %v390 = vpop.f32.mrb[0].mxu0
  %v391 = vpop.f32.mrb[0].mxu0
  %v392 = vadd.f32 %v304, %v391
  %v393 = vpop.f32.mrb[0].mxu0
  %394 = vmatprep.mubr.bf16.mxu0 0
  %395 = vmatmul.mubr.bf16.gmra.mrb[0].mxu0 %v275
  %v396 = vpop.f32.mrb[0].mxu0
  %v397 = vadd.f32 %v304, %v396
  %v398 = vpop.f32.mrb[0].mxu0
  %v399 = vpop.f32.mrb[0].mxu0
  %v400 = vadd.f32 %v304, %v399
  %v401 = vpop.f32.mrb[0].mxu0
  %402 = vmatprep.mubr.bf16.mxu0 0
  %403 = vmatmul.mubr.bf16.gmra.mrb[0].mxu0 %v276
  %v404 = vpop.f32.mrb[0].mxu0
  %v405 = vadd.f32 %v304, %v404
  %v406 = vpop.f32.mrb[0].mxu0
  %v407 = vpop.f32.mrb[0].mxu0
  %v408 = vadd.f32 %v304, %v407
  %v409 = vpop.f32.mrb[0].mxu0
  %410 = vmatprep.mubr.bf16.mxu0 0
  %411 = vmatmul.mubr.bf16.gmra.mrb[0].mxu0 %v277
  %v412 = vpop.f32.mrb[0].mxu0
  %v413 = vadd.f32 %v304, %v412
  %v414 = vpop.f32.mrb[0].mxu0
  %v415 = vpop.f32.mrb[0].mxu0
  %v416 = vadd.f32 %v304, %v415
  %v417 = vpop.f32.mrb[0].mxu0
  %418 = vmatprep.mubr.bf16.mxu0 0
  %419 = vmatmul.mubr.bf16.gmra.mrb[0].mxu0 %v278
  %v420 = vpop.f32.mrb[0].mxu0
  %v421 = vadd.f32 %v304, %v420
  %v422 = vpop.f32.mrb[0].mxu0
  %v423 = vpop.f32.mrb[0].mxu0
  %v424 = vadd.f32 %v304, %v423
  %v425 = vpop.f32.mrb[0].mxu0
  %426 = vmatprep.mubr.bf16.mxu0 0
  %427 = vmatmul.mubr.bf16.gmra.mrb[0].mxu0 %v279
  %v428 = vpop.f32.mrb[0].mxu0
  %v429 = vadd.f32 %v304, %v428
  %v430 = vpop.f32.mrb[0].mxu0
  %v431 = vpop.f32.mrb[0].mxu0
  %v432 = vadd.f32 %v304, %v431
  %v433 = vpop.f32.mrb[0].mxu0
  %434 = vmatprep.mubr.bf16.mxu0 0
  %435 = vmatmul.mubr.bf16.gmra.mrb[0].mxu0 %v280
  %v436 = vpop.f32.mrb[0].mxu0
  %v437 = vadd.f32 %v304, %v436
  %v438 = vpop.f32.mrb[0].mxu0
  %v439 = vpop.f32.mrb[0].mxu0
  %v440 = vadd.f32 %v304, %v439
  %v441 = vpop.f32.mrb[0].mxu0
  %442 = vmatprep.mubr.bf16.mxu0 0
  %443 = vmatmul.mubr.bf16.gmra.mrb[0].mxu0 %v281
  %v444 = vpop.f32.mrb[0].mxu0
  %v445 = vadd.f32 %v304, %v444
  %v446 = vpop.f32.mrb[0].mxu0
  %v447 = vpop.f32.mrb[0].mxu0
  %v448 = vadd.f32 %v304, %v447
  %v449 = vpop.f32.mrb[0].mxu0
  %450 = vdwg.mxu0
  %v451 = vtanh.pop %v389
  %v452 = vtanh.pop %v392
  %v453 = vtanh.pop %v397
  %v454 = vtanh.pop %v400
  %v455 = vtanh.pop %v405
  %v456 = vtanh.pop %v408
  %v457 = vtanh.pop %v413
  %v458 = vtanh.pop %v416
  %v459 = vtanh.pop %v421
  %v460 = vtanh.pop %v424
  %v461 = vtanh.pop %v429
  %v462 = vtanh.pop %v432
  %v463 = vtanh.pop %v437
  %v464 = vtanh.pop %v440
  %v465 = vtanh.pop %v445
  %v466 = vtanh.pop %v448
  %v467 = vpack.c.bf16 %v452, %v451
  %v468 = vpack.c.bf16 %v454, %v453
  %v469 = vpack.c.bf16 %v456, %v455
  %v470 = vpack.c.bf16 %v458, %v457
  %v471 = vpack.c.bf16 %v460, %v459
  %v472 = vpack.c.bf16 %v462, %v461
  %v473 = vpack.c.bf16 %v464, %v463
  %v474 = vpack.c.bf16 %v466, %v465
  %s475 = scalar_lea.vmem %s3, 64
  %v476 = vld [vmem:[%s475] sm:$0xf]
  %v477 = vld [vmem:[%s475 + $0x4] sm:$0xf]
  %v478 = vld [vmem:[%s475 + $0x8] sm:$0xf]
  %v479 = vld [vmem:[%s475 + $0xc] sm:$0xf]
  %v480 = vld [vmem:[%s475 + $0x10] sm:$0xf]
  %v481 = vld [vmem:[%s475 + $0x14] sm:$0xf]
  %v482 = vld [vmem:[%s475 + $0x18] sm:$0xf]
  %v483 = vld [vmem:[%s475 + $0x1c] sm:$0xf]
  %v484 = vld [vmem:[%s475 + $0x20] sm:$0xf]
  %v485 = vld [vmem:[%s475 + $0x24] sm:$0xf]
  %v486 = vld [vmem:[%s475 + $0x28] sm:$0xf]
  %v487 = vld [vmem:[%s475 + $0x2c] sm:$0xf]
  %v488 = vld [vmem:[%s475 + $0x30] sm:$0xf]
  %v489 = vld [vmem:[%s475 + $0x34] sm:$0xf]
  %v490 = vld [vmem:[%s475 + $0x38] sm:$0xf]
  %v491 = vld [vmem:[%s475 + $0x3c] sm:$0xf]
  %s492 = scalar_lea.vmem %s2, 2
  %v493 = vld [vmem:[%s492] sm:$0x1]
  %v495 = vlaneseq
  %v496 = vshrl.u32 %v495, 7
  %v497 = vsub.s32 0, %v496
  %v498 = vrot.slane %v493, %v497
  %v516 = vunpack.c.l.b16 %v476
  %v517 = vunpack.c.l.b16 %v477
  %v518 = vunpack.c.l.b16 %v478
  %v519 = vunpack.c.l.b16 %v479
  %v520 = vunpack.c.l.b16 %v480
  %v521 = vunpack.c.l.b16 %v481
  %v522 = vunpack.c.l.b16 %v482
  %v523 = vunpack.c.l.b16 %v483
  %v524 = vunpack.c.l.b16 %v484
  %v525 = vunpack.c.l.b16 %v485
  %v526 = vunpack.c.l.b16 %v486
  %v527 = vunpack.c.l.b16 %v487
  %v528 = vunpack.c.l.b16 %v488
  %v529 = vunpack.c.l.b16 %v489
  %v530 = vunpack.c.l.b16 %v490
  %v531 = vunpack.c.l.b16 %v491
  %v532 = vpack.c.b16 %v517, %v516
  %v533 = vpack.c.b16 %v519, %v518
  %v534 = vpack.c.b16 %v521, %v520
  %v535 = vpack.c.b16 %v523, %v522
  %v536 = vpack.c.b16 %v525, %v524
  %v537 = vpack.c.b16 %v527, %v526
  %v538 = vpack.c.b16 %v529, %v528
  %v539 = vpack.c.b16 %v531, %v530
  %548 = vmatprep.subr.bf16.mxu0 0
  %549 = vmatpush1.bf16.msra.mxu0 %v532
  %550 = vmatprep.subr.bf16.mxu0 0
  %551 = vmatpush1.bf16.msra.mxu0 %v533
  %552 = vmatprep.subr.bf16.mxu0 0
  %553 = vmatpush1.bf16.msra.mxu0 %v534
  %554 = vmatprep.subr.bf16.mxu0 0
  %555 = vmatpush1.bf16.msra.mxu0 %v535
  %556 = vmatprep.subr.bf16.mxu0 0
  %557 = vmatpush1.bf16.msra.mxu0 %v536
  %558 = vmatprep.subr.bf16.mxu0 0
  %559 = vmatpush1.bf16.msra.mxu0 %v537
  %560 = vmatprep.subr.bf16.mxu0 0
  %561 = vmatpush1.bf16.msra.mxu0 %v538
  %562 = vmatprep.subr.bf16.mxu0 0
  %563 = vmatpush1.bf16.msra.mxu0 %v539
  %564 = vmatprep.subr.bf16.mxu0 0
  %565 = vmatpush1.bf16.msra.mxu0 0
  %566 = vmatprep.subr.bf16.mxu0 0
  %567 = vmatpush1.bf16.msra.mxu0 0
  %568 = vmatprep.subr.bf16.mxu0 0
  %569 = vmatpush1.bf16.msra.mxu0 0
  %570 = vmatprep.subr.bf16.mxu0 0
  %571 = vmatpush1.bf16.msra.mxu0 0
  %572 = vmatprep.subr.bf16.mxu0 0
  %573 = vmatpush1.bf16.msra.mxu0 0
  %574 = vmatprep.subr.bf16.mxu0 0
  %575 = vmatpush1.bf16.msra.mxu0 0
  %576 = vmatprep.subr.bf16.mxu0 0
  %577 = vmatpush1.bf16.msra.mxu0 0
  %578 = vmatprep.subr.bf16.mxu0 0
  %579 = vmatpush1.bf16.msra.mxu0 0
  %580 = vmatprep.mubr.bf16.mxu0 0
  %581 = vmatmul.mubr.bf16.gmra.mrb[0].mxu0 %v467
  %v582 = vpop.f32.mrb[0].mxu0
  %v583 = vadd.f32 %v498, %v582
  %v584 = vpop.f32.mrb[0].mxu0
  %v585 = vpop.f32.mrb[0].mxu0
  %v586 = vadd.f32 %v498, %v585
  %v587 = vpop.f32.mrb[0].mxu0
  %588 = vmatprep.mubr.bf16.mxu0 0
  %589 = vmatmul.mubr.bf16.gmra.mrb[0].mxu0 %v468
  %v590 = vpop.f32.mrb[0].mxu0
  %v591 = vadd.f32 %v498, %v590
  %v592 = vpop.f32.mrb[0].mxu0
  %v593 = vpop.f32.mrb[0].mxu0
  %v594 = vadd.f32 %v498, %v593
  %v595 = vpop.f32.mrb[0].mxu0
  %596 = vmatprep.mubr.bf16.mxu0 0
  %597 = vmatmul.mubr.bf16.gmra.mrb[0].mxu0 %v469
  %v598 = vpop.f32.mrb[0].mxu0
  %v599 = vadd.f32 %v498, %v598
  %v600 = vpop.f32.mrb[0].mxu0
  %v601 = vpop.f32.mrb[0].mxu0
  %v602 = vadd.f32 %v498, %v601
  %v603 = vpop.f32.mrb[0].mxu0
  %604 = vmatprep.mubr.bf16.mxu0 0
  %605 = vmatmul.mubr.bf16.gmra.mrb[0].mxu0 %v470
  %v606 = vpop.f32.mrb[0].mxu0
  %v607 = vadd.f32 %v498, %v606
  %v608 = vpop.f32.mrb[0].mxu0
  %v609 = vpop.f32.mrb[0].mxu0
  %v610 = vadd.f32 %v498, %v609
  %v611 = vpop.f32.mrb[0].mxu0
  %612 = vmatprep.mubr.bf16.mxu0 0
  %613 = vmatmul.mubr.bf16.gmra.mrb[0].mxu0 %v471
  %v614 = vpop.f32.mrb[0].mxu0
  %v615 = vadd.f32 %v498, %v614
  %v616 = vpop.f32.mrb[0].mxu0
  %v617 = vpop.f32.mrb[0].mxu0
  %v618 = vadd.f32 %v498, %v617
  %v619 = vpop.f32.mrb[0].mxu0
  %620 = vmatprep.mubr.bf16.mxu0 0
  %621 = vmatmul.mubr.bf16.gmra.mrb[0].mxu0 %v472
  %v622 = vpop.f32.mrb[0].mxu0
  %v623 = vadd.f32 %v498, %v622
  %v624 = vpop.f32.mrb[0].mxu0
  %v625 = vpop.f32.mrb[0].mxu0
  %v626 = vadd.f32 %v498, %v625
  %v627 = vpop.f32.mrb[0].mxu0
  %628 = vmatprep.mubr.bf16.mxu0 0
  %629 = vmatmul.mubr.bf16.gmra.mrb[0].mxu0 %v473
  %v630 = vpop.f32.mrb[0].mxu0
  %v631 = vadd.f32 %v498, %v630
  %v632 = vpop.f32.mrb[0].mxu0
  %v633 = vpop.f32.mrb[0].mxu0
  %v634 = vadd.f32 %v498, %v633
  %v635 = vpop.f32.mrb[0].mxu0
  %636 = vmatprep.mubr.bf16.mxu0 0
  %637 = vmatmul.mubr.bf16.gmra.mrb[0].mxu0 %v474
  %v638 = vpop.f32.mrb[0].mxu0
  %v639 = vadd.f32 %v498, %v638
  %v640 = vpop.f32.mrb[0].mxu0
  %v641 = vpop.f32.mrb[0].mxu0
  %v642 = vadd.f32 %v498, %v641
  %v643 = vpop.f32.mrb[0].mxu0
  %644 = vdwg.mxu0
  %v645 = vtanh.pop %v583
  %v646 = vtanh.pop %v586
  %v647 = vtanh.pop %v591
  %v648 = vtanh.pop %v594
  %v649 = vtanh.pop %v599
  %v650 = vtanh.pop %v602
  %v651 = vtanh.pop %v607
  %v652 = vtanh.pop %v610
  %v653 = vtanh.pop %v615
  %v654 = vtanh.pop %v618
  %v655 = vtanh.pop %v623
  %v656 = vtanh.pop %v626
  %v657 = vtanh.pop %v631
  %v658 = vtanh.pop %v634
  %v659 = vtanh.pop %v639
  %v660 = vtanh.pop %v642
  %v661 = vpack.c.bf16 %v646, %v645
  %v662 = vpack.c.bf16 %v648, %v647
  %v663 = vpack.c.bf16 %v650, %v649
  %v664 = vpack.c.bf16 %v652, %v651
  %v665 = vpack.c.bf16 %v654, %v653
  %v666 = vpack.c.bf16 %v656, %v655
  %v667 = vpack.c.bf16 %v658, %v657
  %v668 = vpack.c.bf16 %v660, %v659
  %s669 = scalar_lea.vmem %s3, 128
  %v670 = vld [vmem:[%s669] sm:$0xf]
  %v671 = vld [vmem:[%s669 + $0x4] sm:$0xf]
  %v672 = vld [vmem:[%s669 + $0x8] sm:$0xf]
  %v673 = vld [vmem:[%s669 + $0xc] sm:$0xf]
  %v674 = vld [vmem:[%s669 + $0x10] sm:$0xf]
  %v675 = vld [vmem:[%s669 + $0x14] sm:$0xf]
  %v676 = vld [vmem:[%s669 + $0x18] sm:$0xf]
  %v677 = vld [vmem:[%s669 + $0x1c] sm:$0xf]
  %v678 = vld [vmem:[%s669 + $0x20] sm:$0xf]
  %v679 = vld [vmem:[%s669 + $0x24] sm:$0xf]
  %v680 = vld [vmem:[%s669 + $0x28] sm:$0xf]
  %v681 = vld [vmem:[%s669 + $0x2c] sm:$0xf]
  %v682 = vld [vmem:[%s669 + $0x30] sm:$0xf]
  %v683 = vld [vmem:[%s669 + $0x34] sm:$0xf]
  %v684 = vld [vmem:[%s669 + $0x38] sm:$0xf]
  %v685 = vld [vmem:[%s669 + $0x3c] sm:$0xf]
  %s686 = scalar_lea.vmem %s2, 3
  %v687 = vld [vmem:[%s686] sm:$0x1]
  %v689 = vlaneseq
  %v690 = vshrl.u32 %v689, 7
  %v691 = vsub.s32 0, %v690
  %v692 = vrot.slane %v687, %v691
  %v710 = vunpack.c.l.b16 %v670
  %v711 = vunpack.c.l.b16 %v671
  %v712 = vunpack.c.l.b16 %v672
  %v713 = vunpack.c.l.b16 %v673
  %v714 = vunpack.c.l.b16 %v674
  %v715 = vunpack.c.l.b16 %v675
  %v716 = vunpack.c.l.b16 %v676
  %v717 = vunpack.c.l.b16 %v677
  %v718 = vunpack.c.l.b16 %v678
  %v719 = vunpack.c.l.b16 %v679
  %v720 = vunpack.c.l.b16 %v680
  %v721 = vunpack.c.l.b16 %v681
  %v722 = vunpack.c.l.b16 %v682
  %v723 = vunpack.c.l.b16 %v683
  %v724 = vunpack.c.l.b16 %v684
  %v725 = vunpack.c.l.b16 %v685
  %v726 = vpack.c.b16 %v711, %v710
  %v727 = vpack.c.b16 %v713, %v712
  %v728 = vpack.c.b16 %v715, %v714
  %v729 = vpack.c.b16 %v717, %v716
  %v730 = vpack.c.b16 %v719, %v718
  %v731 = vpack.c.b16 %v721, %v720
  %v732 = vpack.c.b16 %v723, %v722
  %v733 = vpack.c.b16 %v725, %v724
  %742 = vmatprep.subr.bf16.mxu0 0
  %743 = vmatpush1.bf16.msra.mxu0 %v726
  %744 = vmatprep.subr.bf16.mxu0 0
  %745 = vmatpush1.bf16.msra.mxu0 %v727
  %746 = vmatprep.subr.bf16.mxu0 0
  %747 = vmatpush1.bf16.msra.mxu0 %v728
  %748 = vmatprep.subr.bf16.mxu0 0
  %749 = vmatpush1.bf16.msra.mxu0 %v729
  %750 = vmatprep.subr.bf16.mxu0 0
  %751 = vmatpush1.bf16.msra.mxu0 %v730
  %752 = vmatprep.subr.bf16.mxu0 0
  %753 = vmatpush1.bf16.msra.mxu0 %v731
  %754 = vmatprep.subr.bf16.mxu0 0
  %755 = vmatpush1.bf16.msra.mxu0 %v732
  %756 = vmatprep.subr.bf16.mxu0 0
  %757 = vmatpush1.bf16.msra.mxu0 %v733
  %758 = vmatprep.subr.bf16.mxu0 0
  %759 = vmatpush1.bf16.msra.mxu0 0
  %760 = vmatprep.subr.bf16.mxu0 0
  %761 = vmatpush1.bf16.msra.mxu0 0
  %762 = vmatprep.subr.bf16.mxu0 0
  %763 = vmatpush1.bf16.msra.mxu0 0
  %764 = vmatprep.subr.bf16.mxu0 0
  %765 = vmatpush1.bf16.msra.mxu0 0
  %766 = vmatprep.subr.bf16.mxu0 0
  %767 = vmatpush1.bf16.msra.mxu0 0
  %768 = vmatprep.subr.bf16.mxu0 0
  %769 = vmatpush1.bf16.msra.mxu0 0
  %770 = vmatprep.subr.bf16.mxu0 0
  %771 = vmatpush1.bf16.msra.mxu0 0
  %772 = vmatprep.subr.bf16.mxu0 0
  %773 = vmatpush1.bf16.msra.mxu0 0
  %774 = vmatprep.mubr.bf16.mxu0 0
  %775 = vmatmul.mubr.bf16.gmra.mrb[0].mxu0 %v661
  %v776 = vpop.f32.mrb[0].mxu0
  %v777 = vadd.f32 %v692, %v776
  %v778 = vpop.f32.mrb[0].mxu0
  %v779 = vpop.f32.mrb[0].mxu0
  %v780 = vadd.f32 %v692, %v779
  %v781 = vpop.f32.mrb[0].mxu0
  %782 = vmatprep.mubr.bf16.mxu0 0
  %783 = vmatmul.mubr.bf16.gmra.mrb[0].mxu0 %v662
  %v784 = vpop.f32.mrb[0].mxu0
  %v785 = vadd.f32 %v692, %v784
  %v786 = vpop.f32.mrb[0].mxu0
  %v787 = vpop.f32.mrb[0].mxu0
  %v788 = vadd.f32 %v692, %v787
  %v789 = vpop.f32.mrb[0].mxu0
  %790 = vmatprep.mubr.bf16.mxu0 0
  %791 = vmatmul.mubr.bf16.gmra.mrb[0].mxu0 %v663
  %v792 = vpop.f32.mrb[0].mxu0
  %v793 = vadd.f32 %v692, %v792
  %v794 = vpop.f32.mrb[0].mxu0
  %v795 = vpop.f32.mrb[0].mxu0
  %v796 = vadd.f32 %v692, %v795
  %v797 = vpop.f32.mrb[0].mxu0
  %798 = vmatprep.mubr.bf16.mxu0 0
  %799 = vmatmul.mubr.bf16.gmra.mrb[0].mxu0 %v664
  %v800 = vpop.f32.mrb[0].mxu0
  %v801 = vadd.f32 %v692, %v800
  %v802 = vpop.f32.mrb[0].mxu0
  %v803 = vpop.f32.mrb[0].mxu0
  %v804 = vadd.f32 %v692, %v803
  %v805 = vpop.f32.mrb[0].mxu0
  %806 = vmatprep.mubr.bf16.mxu0 0
  %807 = vmatmul.mubr.bf16.gmra.mrb[0].mxu0 %v665
  %v808 = vpop.f32.mrb[0].mxu0
  %v809 = vadd.f32 %v692, %v808
  %v810 = vpop.f32.mrb[0].mxu0
  %v811 = vpop.f32.mrb[0].mxu0
  %v812 = vadd.f32 %v692, %v811
  %v813 = vpop.f32.mrb[0].mxu0
  %814 = vmatprep.mubr.bf16.mxu0 0
  %815 = vmatmul.mubr.bf16.gmra.mrb[0].mxu0 %v666
  %v816 = vpop.f32.mrb[0].mxu0
  %v817 = vadd.f32 %v692, %v816
  %v818 = vpop.f32.mrb[0].mxu0
  %v819 = vpop.f32.mrb[0].mxu0
  %v820 = vadd.f32 %v692, %v819
  %v821 = vpop.f32.mrb[0].mxu0
  %822 = vmatprep.mubr.bf16.mxu0 0
  %823 = vmatmul.mubr.bf16.gmra.mrb[0].mxu0 %v667
  %v824 = vpop.f32.mrb[0].mxu0
  %v825 = vadd.f32 %v692, %v824
  %v826 = vpop.f32.mrb[0].mxu0
  %v827 = vpop.f32.mrb[0].mxu0
  %v828 = vadd.f32 %v692, %v827
  %v829 = vpop.f32.mrb[0].mxu0
  %830 = vmatprep.mubr.bf16.mxu0 0
  %831 = vmatmul.mubr.bf16.gmra.mrb[0].mxu0 %v668
  %v832 = vpop.f32.mrb[0].mxu0
  %v833 = vadd.f32 %v692, %v832
  %v834 = vpop.f32.mrb[0].mxu0
  %v835 = vpop.f32.mrb[0].mxu0
  %v836 = vadd.f32 %v692, %v835
  %v837 = vpop.f32.mrb[0].mxu0
  %838 = vdwg.mxu0
  %v839 = vtanh.pop %v777
  %v840 = vtanh.pop %v780
  %v841 = vtanh.pop %v785
  %v842 = vtanh.pop %v788
  %v843 = vtanh.pop %v793
  %v844 = vtanh.pop %v796
  %v845 = vtanh.pop %v801
  %v846 = vtanh.pop %v804
  %v847 = vtanh.pop %v809
  %v848 = vtanh.pop %v812
  %v849 = vtanh.pop %v817
  %v850 = vtanh.pop %v820
  %v851 = vtanh.pop %v825
  %v852 = vtanh.pop %v828
  %v853 = vtanh.pop %v833
  %v854 = vtanh.pop %v836
  %v855 = vpack.c.bf16 %v840, %v839
  %v856 = vpack.c.bf16 %v842, %v841
  %v857 = vpack.c.bf16 %v844, %v843
  %v858 = vpack.c.bf16 %v846, %v845
  %v859 = vpack.c.bf16 %v848, %v847
  %v860 = vpack.c.bf16 %v850, %v849
  %v861 = vpack.c.bf16 %v852, %v851
  %v862 = vpack.c.bf16 %v854, %v853
  %s863 = scalar_lea.vmem %s3, 192
  %v864 = vld [vmem:[%s863] sm:$0xf]
  %v865 = vld [vmem:[%s863 + $0x4] sm:$0xf]
  %v866 = vld [vmem:[%s863 + $0x8] sm:$0xf]
  %v867 = vld [vmem:[%s863 + $0xc] sm:$0xf]
  %v868 = vld [vmem:[%s863 + $0x10] sm:$0xf]
  %v869 = vld [vmem:[%s863 + $0x14] sm:$0xf]
  %v870 = vld [vmem:[%s863 + $0x18] sm:$0xf]
  %v871 = vld [vmem:[%s863 + $0x1c] sm:$0xf]
  %v872 = vld [vmem:[%s863 + $0x20] sm:$0xf]
  %v873 = vld [vmem:[%s863 + $0x24] sm:$0xf]
  %v874 = vld [vmem:[%s863 + $0x28] sm:$0xf]
  %v875 = vld [vmem:[%s863 + $0x2c] sm:$0xf]
  %v876 = vld [vmem:[%s863 + $0x30] sm:$0xf]
  %v877 = vld [vmem:[%s863 + $0x34] sm:$0xf]
  %v878 = vld [vmem:[%s863 + $0x38] sm:$0xf]
  %v879 = vld [vmem:[%s863 + $0x3c] sm:$0xf]
  %s880 = scalar_lea.vmem %s2, 4
  %v881 = vld [vmem:[%s880] sm:$0x1]
  %v883 = vlaneseq
  %v884 = vshrl.u32 %v883, 7
  %v885 = vsub.s32 0, %v884
  %v886 = vrot.slane %v881, %v885
  %v904 = vunpack.c.l.b16 %v864
  %v905 = vunpack.c.l.b16 %v865
  %v906 = vunpack.c.l.b16 %v866
  %v907 = vunpack.c.l.b16 %v867
  %v908 = vunpack.c.l.b16 %v868
  %v909 = vunpack.c.l.b16 %v869
  %v910 = vunpack.c.l.b16 %v870
  %v911 = vunpack.c.l.b16 %v871
  %v912 = vunpack.c.l.b16 %v872
  %v913 = vunpack.c.l.b16 %v873
  %v914 = vunpack.c.l.b16 %v874
  %v915 = vunpack.c.l.b16 %v875
  %v916 = vunpack.c.l.b16 %v876
  %v917 = vunpack.c.l.b16 %v877
  %v918 = vunpack.c.l.b16 %v878
  %v919 = vunpack.c.l.b16 %v879
  %v920 = vpack.c.b16 %v905, %v904
  %v921 = vpack.c.b16 %v907, %v906
  %v922 = vpack.c.b16 %v909, %v908
  %v923 = vpack.c.b16 %v911, %v910
  %v924 = vpack.c.b16 %v913, %v912
  %v925 = vpack.c.b16 %v915, %v914
  %v926 = vpack.c.b16 %v917, %v916
  %v927 = vpack.c.b16 %v919, %v918
  %936 = vmatprep.subr.bf16.mxu0 0
  %937 = vmatpush1.bf16.msra.mxu0 %v920
  %938 = vmatprep.subr.bf16.mxu0 0
  %939 = vmatpush1.bf16.msra.mxu0 %v921
  %940 = vmatprep.subr.bf16.mxu0 0
  %941 = vmatpush1.bf16.msra.mxu0 %v922
  %942 = vmatprep.subr.bf16.mxu0 0
  %943 = vmatpush1.bf16.msra.mxu0 %v923
  %944 = vmatprep.subr.bf16.mxu0 0
  %945 = vmatpush1.bf16.msra.mxu0 %v924
  %946 = vmatprep.subr.bf16.mxu0 0
  %947 = vmatpush1.bf16.msra.mxu0 %v925
  %948 = vmatprep.subr.bf16.mxu0 0
  %949 = vmatpush1.bf16.msra.mxu0 %v926
  %950 = vmatprep.subr.bf16.mxu0 0
  %951 = vmatpush1.bf16.msra.mxu0 %v927
  %952 = vmatprep.subr.bf16.mxu0 0
  %953 = vmatpush1.bf16.msra.mxu0 0
  %954 = vmatprep.subr.bf16.mxu0 0
  %955 = vmatpush1.bf16.msra.mxu0 0
  %956 = vmatprep.subr.bf16.mxu0 0
  %957 = vmatpush1.bf16.msra.mxu0 0
  %958 = vmatprep.subr.bf16.mxu0 0
  %959 = vmatpush1.bf16.msra.mxu0 0
  %960 = vmatprep.subr.bf16.mxu0 0
  %961 = vmatpush1.bf16.msra.mxu0 0
  %962 = vmatprep.subr.bf16.mxu0 0
  %963 = vmatpush1.bf16.msra.mxu0 0
  %964 = vmatprep.subr.bf16.mxu0 0
  %965 = vmatpush1.bf16.msra.mxu0 0
  %966 = vmatprep.subr.bf16.mxu0 0
  %967 = vmatpush1.bf16.msra.mxu0 0
  %968 = vmatprep.mubr.bf16.mxu0 0
  %969 = vmatmul.mubr.bf16.gmra.mrb[0].mxu0 %v855
  %v970 = vpop.f32.mrb[0].mxu0
  %v971 = vadd.f32 %v886, %v970
  %v972 = vpop.f32.mrb[0].mxu0
  %v973 = vpop.f32.mrb[0].mxu0
  %v974 = vadd.f32 %v886, %v973
  %v975 = vpop.f32.mrb[0].mxu0
  %976 = vmatprep.mubr.bf16.mxu0 0
  %977 = vmatmul.mubr.bf16.gmra.mrb[0].mxu0 %v856
  %v978 = vpop.f32.mrb[0].mxu0
  %v979 = vadd.f32 %v886, %v978
  %v980 = vpop.f32.mrb[0].mxu0
  %v981 = vpop.f32.mrb[0].mxu0
  %v982 = vadd.f32 %v886, %v981
  %v983 = vpop.f32.mrb[0].mxu0
  %984 = vmatprep.mubr.bf16.mxu0 0
  %985 = vmatmul.mubr.bf16.gmra.mrb[0].mxu0 %v857
  %v986 = vpop.f32.mrb[0].mxu0
  %v987 = vadd.f32 %v886, %v986
  %v988 = vpop.f32.mrb[0].mxu0
  %v989 = vpop.f32.mrb[0].mxu0
  %v990 = vadd.f32 %v886, %v989
  %v991 = vpop.f32.mrb[0].mxu0
  %992 = vmatprep.mubr.bf16.mxu0 0
  %993 = vmatmul.mubr.bf16.gmra.mrb[0].mxu0 %v858
  %v994 = vpop.f32.mrb[0].mxu0
  %v995 = vadd.f32 %v886, %v994
  %v996 = vpop.f32.mrb[0].mxu0
  %v997 = vpop.f32.mrb[0].mxu0
  %v998 = vadd.f32 %v886, %v997
  %v999 = vpop.f32.mrb[0].mxu0
  %1000 = vmatprep.mubr.bf16.mxu0 0
  %1001 = vmatmul.mubr.bf16.gmra.mrb[0].mxu0 %v859
  %v1002 = vpop.f32.mrb[0].mxu0
  %v1003 = vadd.f32 %v886, %v1002
  %v1004 = vpop.f32.mrb[0].mxu0
  %v1005 = vpop.f32.mrb[0].mxu0
  %v1006 = vadd.f32 %v886, %v1005
  %v1007 = vpop.f32.mrb[0].mxu0
  %1008 = vmatprep.mubr.bf16.mxu0 0
  %1009 = vmatmul.mubr.bf16.gmra.mrb[0].mxu0 %v860
  %v1010 = vpop.f32.mrb[0].mxu0
  %v1011 = vadd.f32 %v886, %v1010
  %v1012 = vpop.f32.mrb[0].mxu0
  %v1013 = vpop.f32.mrb[0].mxu0
  %v1014 = vadd.f32 %v886, %v1013
  %v1015 = vpop.f32.mrb[0].mxu0
  %1016 = vmatprep.mubr.bf16.mxu0 0
  %1017 = vmatmul.mubr.bf16.gmra.mrb[0].mxu0 %v861
  %v1018 = vpop.f32.mrb[0].mxu0
  %v1019 = vadd.f32 %v886, %v1018
  %v1020 = vpop.f32.mrb[0].mxu0
  %v1021 = vpop.f32.mrb[0].mxu0
  %v1022 = vadd.f32 %v886, %v1021
  %v1023 = vpop.f32.mrb[0].mxu0
  %1024 = vmatprep.mubr.bf16.mxu0 0
  %1025 = vmatmul.mubr.bf16.gmra.mrb[0].mxu0 %v862
  %v1026 = vpop.f32.mrb[0].mxu0
  %v1027 = vadd.f32 %v886, %v1026
  %v1028 = vpop.f32.mrb[0].mxu0
  %v1029 = vpop.f32.mrb[0].mxu0
  %v1030 = vadd.f32 %v886, %v1029
  %v1031 = vpop.f32.mrb[0].mxu0
  %1032 = vdwg.mxu0
  %v1033 = vtanh.pop %v971
  %v1034 = vtanh.pop %v974
  %v1035 = vtanh.pop %v979
  %v1036 = vtanh.pop %v982
  %v1037 = vtanh.pop %v987
  %v1038 = vtanh.pop %v990
  %v1039 = vtanh.pop %v995
  %v1040 = vtanh.pop %v998
  %v1041 = vtanh.pop %v1003
  %v1042 = vtanh.pop %v1006
  %v1043 = vtanh.pop %v1011
  %v1044 = vtanh.pop %v1014
  %v1045 = vtanh.pop %v1019
  %v1046 = vtanh.pop %v1022
  %v1047 = vtanh.pop %v1027
  %v1048 = vtanh.pop %v1030
  %v1049 = vpack.c.bf16 %v1034, %v1033
  %v1050 = vpack.c.bf16 %v1036, %v1035
  %v1051 = vpack.c.bf16 %v1038, %v1037
  %v1052 = vpack.c.bf16 %v1040, %v1039
  %v1053 = vpack.c.bf16 %v1042, %v1041
  %v1054 = vpack.c.bf16 %v1044, %v1043
  %v1055 = vpack.c.bf16 %v1046, %v1045
  %v1056 = vpack.c.bf16 %v1048, %v1047
  %s1057 = scalar_lea.vmem %s3, 256
  %v1058 = vld [vmem:[%s1057] sm:$0xf]
  %v1059 = vld [vmem:[%s1057 + $0x4] sm:$0xf]
  %v1060 = vld [vmem:[%s1057 + $0x8] sm:$0xf]
  %v1061 = vld [vmem:[%s1057 + $0xc] sm:$0xf]
  %v1062 = vld [vmem:[%s1057 + $0x10] sm:$0xf]
  %v1063 = vld [vmem:[%s1057 + $0x14] sm:$0xf]
  %v1064 = vld [vmem:[%s1057 + $0x18] sm:$0xf]
  %v1065 = vld [vmem:[%s1057 + $0x1c] sm:$0xf]
  %v1066 = vld [vmem:[%s1057 + $0x20] sm:$0xf]
  %v1067 = vld [vmem:[%s1057 + $0x24] sm:$0xf]
  %v1068 = vld [vmem:[%s1057 + $0x28] sm:$0xf]
  %v1069 = vld [vmem:[%s1057 + $0x2c] sm:$0xf]
  %v1070 = vld [vmem:[%s1057 + $0x30] sm:$0xf]
  %v1071 = vld [vmem:[%s1057 + $0x34] sm:$0xf]
  %v1072 = vld [vmem:[%s1057 + $0x38] sm:$0xf]
  %v1073 = vld [vmem:[%s1057 + $0x3c] sm:$0xf]
  %s1074 = scalar_lea.vmem %s2, 5
  %v1075 = vld [vmem:[%s1074] sm:$0x1]
  %v1077 = vlaneseq
  %v1078 = vshrl.u32 %v1077, 7
  %v1079 = vsub.s32 0, %v1078
  %v1080 = vrot.slane %v1075, %v1079
  %v1098 = vunpack.c.l.b16 %v1058
  %v1099 = vunpack.c.l.b16 %v1059
  %v1100 = vunpack.c.l.b16 %v1060
  %v1101 = vunpack.c.l.b16 %v1061
  %v1102 = vunpack.c.l.b16 %v1062
  %v1103 = vunpack.c.l.b16 %v1063
  %v1104 = vunpack.c.l.b16 %v1064
  %v1105 = vunpack.c.l.b16 %v1065
  %v1106 = vunpack.c.l.b16 %v1066
  %v1107 = vunpack.c.l.b16 %v1067
  %v1108 = vunpack.c.l.b16 %v1068
  %v1109 = vunpack.c.l.b16 %v1069
  %v1110 = vunpack.c.l.b16 %v1070
  %v1111 = vunpack.c.l.b16 %v1071
  %v1112 = vunpack.c.l.b16 %v1072
  %v1113 = vunpack.c.l.b16 %v1073
  %v1114 = vpack.c.b16 %v1099, %v1098
  %v1115 = vpack.c.b16 %v1101, %v1100
  %v1116 = vpack.c.b16 %v1103, %v1102
  %v1117 = vpack.c.b16 %v1105, %v1104
  %v1118 = vpack.c.b16 %v1107, %v1106
  %v1119 = vpack.c.b16 %v1109, %v1108
  %v1120 = vpack.c.b16 %v1111, %v1110
  %v1121 = vpack.c.b16 %v1113, %v1112
  %1130 = vmatprep.subr.bf16.mxu0 0
  %1131 = vmatpush1.bf16.msra.mxu0 %v1114
  %1132 = vmatprep.subr.bf16.mxu0 0
  %1133 = vmatpush1.bf16.msra.mxu0 %v1115
  %1134 = vmatprep.subr.bf16.mxu0 0
  %1135 = vmatpush1.bf16.msra.mxu0 %v1116
  %1136 = vmatprep.subr.bf16.mxu0 0
  %1137 = vmatpush1.bf16.msra.mxu0 %v1117
  %1138 = vmatprep.subr.bf16.mxu0 0
  %1139 = vmatpush1.bf16.msra.mxu0 %v1118
  %1140 = vmatprep.subr.bf16.mxu0 0
  %1141 = vmatpush1.bf16.msra.mxu0 %v1119
  %1142 = vmatprep.subr.bf16.mxu0 0
  %1143 = vmatpush1.bf16.msra.mxu0 %v1120
  %1144 = vmatprep.subr.bf16.mxu0 0
  %1145 = vmatpush1.bf16.msra.mxu0 %v1121
  %1146 = vmatprep.subr.bf16.mxu0 0
  %1147 = vmatpush1.bf16.msra.mxu0 0
  %1148 = vmatprep.subr.bf16.mxu0 0
  %1149 = vmatpush1.bf16.msra.mxu0 0
  %1150 = vmatprep.subr.bf16.mxu0 0
  %1151 = vmatpush1.bf16.msra.mxu0 0
  %1152 = vmatprep.subr.bf16.mxu0 0
  %1153 = vmatpush1.bf16.msra.mxu0 0
  %1154 = vmatprep.subr.bf16.mxu0 0
  %1155 = vmatpush1.bf16.msra.mxu0 0
  %1156 = vmatprep.subr.bf16.mxu0 0
  %1157 = vmatpush1.bf16.msra.mxu0 0
  %1158 = vmatprep.subr.bf16.mxu0 0
  %1159 = vmatpush1.bf16.msra.mxu0 0
  %1160 = vmatprep.subr.bf16.mxu0 0
  %1161 = vmatpush1.bf16.msra.mxu0 0
  %1162 = vmatprep.mubr.bf16.mxu0 0
  %1163 = vmatmul.mubr.bf16.gmra.mrb[0].mxu0 %v1049
  %v1164 = vpop.f32.mrb[0].mxu0
  %v1165 = vadd.f32 %v1080, %v1164
  %v1166 = vpop.f32.mrb[0].mxu0
  %v1167 = vpop.f32.mrb[0].mxu0
  %v1168 = vadd.f32 %v1080, %v1167
  %v1169 = vpop.f32.mrb[0].mxu0
  %1170 = vmatprep.mubr.bf16.mxu0 0
  %1171 = vmatmul.mubr.bf16.gmra.mrb[0].mxu0 %v1050
  %v1172 = vpop.f32.mrb[0].mxu0
  %v1173 = vadd.f32 %v1080, %v1172
  %v1174 = vpop.f32.mrb[0].mxu0
  %v1175 = vpop.f32.mrb[0].mxu0
  %v1176 = vadd.f32 %v1080, %v1175
  %v1177 = vpop.f32.mrb[0].mxu0
  %1178 = vmatprep.mubr.bf16.mxu0 0
  %1179 = vmatmul.mubr.bf16.gmra.mrb[0].mxu0 %v1051
  %v1180 = vpop.f32.mrb[0].mxu0
  %v1181 = vadd.f32 %v1080, %v1180
  %v1182 = vpop.f32.mrb[0].mxu0
  %v1183 = vpop.f32.mrb[0].mxu0
  %v1184 = vadd.f32 %v1080, %v1183
  %v1185 = vpop.f32.mrb[0].mxu0
  %1186 = vmatprep.mubr.bf16.mxu0 0
  %1187 = vmatmul.mubr.bf16.gmra.mrb[0].mxu0 %v1052
  %v1188 = vpop.f32.mrb[0].mxu0
  %v1189 = vadd.f32 %v1080, %v1188
  %v1190 = vpop.f32.mrb[0].mxu0
  %v1191 = vpop.f32.mrb[0].mxu0
  %v1192 = vadd.f32 %v1080, %v1191
  %v1193 = vpop.f32.mrb[0].mxu0
  %1194 = vmatprep.mubr.bf16.mxu0 0
  %1195 = vmatmul.mubr.bf16.gmra.mrb[0].mxu0 %v1053
  %v1196 = vpop.f32.mrb[0].mxu0
  %v1197 = vadd.f32 %v1080, %v1196
  %v1198 = vpop.f32.mrb[0].mxu0
  %v1199 = vpop.f32.mrb[0].mxu0
  %v1200 = vadd.f32 %v1080, %v1199
  %v1201 = vpop.f32.mrb[0].mxu0
  %1202 = vmatprep.mubr.bf16.mxu0 0
  %1203 = vmatmul.mubr.bf16.gmra.mrb[0].mxu0 %v1054
  %v1204 = vpop.f32.mrb[0].mxu0
  %v1205 = vadd.f32 %v1080, %v1204
  %v1206 = vpop.f32.mrb[0].mxu0
  %v1207 = vpop.f32.mrb[0].mxu0
  %v1208 = vadd.f32 %v1080, %v1207
  %v1209 = vpop.f32.mrb[0].mxu0
  %1210 = vmatprep.mubr.bf16.mxu0 0
  %1211 = vmatmul.mubr.bf16.gmra.mrb[0].mxu0 %v1055
  %v1212 = vpop.f32.mrb[0].mxu0
  %v1213 = vadd.f32 %v1080, %v1212
  %v1214 = vpop.f32.mrb[0].mxu0
  %v1215 = vpop.f32.mrb[0].mxu0
  %v1216 = vadd.f32 %v1080, %v1215
  %v1217 = vpop.f32.mrb[0].mxu0
  %1218 = vmatprep.mubr.bf16.mxu0 0
  %1219 = vmatmul.mubr.bf16.gmra.mrb[0].mxu0 %v1056
  %v1220 = vpop.f32.mrb[0].mxu0
  %v1221 = vadd.f32 %v1080, %v1220
  %v1222 = vpop.f32.mrb[0].mxu0
  %v1223 = vpop.f32.mrb[0].mxu0
  %v1224 = vadd.f32 %v1080, %v1223
  %v1225 = vpop.f32.mrb[0].mxu0
  %1226 = vdwg.mxu0
  %v1227 = vtanh.pop %v1165
  %v1228 = vtanh.pop %v1168
  %v1229 = vtanh.pop %v1173
  %v1230 = vtanh.pop %v1176
  %v1231 = vtanh.pop %v1181
  %v1232 = vtanh.pop %v1184
  %v1233 = vtanh.pop %v1189
  %v1234 = vtanh.pop %v1192
  %v1235 = vtanh.pop %v1197
  %v1236 = vtanh.pop %v1200
  %v1237 = vtanh.pop %v1205
  %v1238 = vtanh.pop %v1208
  %v1239 = vtanh.pop %v1213
  %v1240 = vtanh.pop %v1216
  %v1241 = vtanh.pop %v1221
  %v1242 = vtanh.pop %v1224
  %vm1243 = vcmask 23552
  %1244 = vst.msk [vmem:[%s4] sm:$0xff] %vm1243, %v1227
  %1245 = vst.msk [vmem:[%s4 + $0x8] sm:$0xff] %vm1243, %v1228
  %1246 = vst.msk [vmem:[%s4 + $0x10] sm:$0xff] %vm1243, %v1229
  %1247 = vst.msk [vmem:[%s4 + $0x18] sm:$0xff] %vm1243, %v1230
  %1248 = vst.msk [vmem:[%s4 + $0x20] sm:$0xff] %vm1243, %v1231
  %1249 = vst.msk [vmem:[%s4 + $0x28] sm:$0xff] %vm1243, %v1232
  %1250 = vst.msk [vmem:[%s4 + $0x30] sm:$0xff] %vm1243, %v1233
  %1251 = vst.msk [vmem:[%s4 + $0x38] sm:$0xff] %vm1243, %v1234
  %1252 = vst.msk [vmem:[%s4 + $0x40] sm:$0xff] %vm1243, %v1235
  %1253 = vst.msk [vmem:[%s4 + $0x48] sm:$0xff] %vm1243, %v1236
  %1254 = vst.msk [vmem:[%s4 + $0x50] sm:$0xff] %vm1243, %v1237
  %1255 = vst.msk [vmem:[%s4 + $0x58] sm:$0xff] %vm1243, %v1238
  %1256 = vst.msk [vmem:[%s4 + $0x60] sm:$0xff] %vm1243, %v1239
  %1257 = vst.msk [vmem:[%s4 + $0x68] sm:$0xff] %vm1243, %v1240
  %1258 = vst.msk [vmem:[%s4 + $0x70] sm:$0xff] %vm1243, %v1241
  %1259 = vst.msk [vmem:[%s4 + $0x78] sm:$0xff] %vm1243, %v1242
  %v1260 = vld [vmem:[%s0 + $0x80] sm:$0xff]
  %v1261 = vld [vmem:[%s0 + $0x88] sm:$0xff]
  %v1262 = vld [vmem:[%s0 + $0x90] sm:$0xff]
  %v1263 = vld [vmem:[%s0 + $0x98] sm:$0xff]
  %v1264 = vld [vmem:[%s0 + $0xa0] sm:$0xff]
  %v1265 = vld [vmem:[%s0 + $0xa8] sm:$0xff]
  %v1266 = vld [vmem:[%s0 + $0xb0] sm:$0xff]
  %v1267 = vld [vmem:[%s0 + $0xb8] sm:$0xff]
  %v1268 = vld [vmem:[%s0 + $0xc0] sm:$0xff]
  %v1269 = vld [vmem:[%s0 + $0xc8] sm:$0xff]
  %v1270 = vld [vmem:[%s0 + $0xd0] sm:$0xff]
  %v1271 = vld [vmem:[%s0 + $0xd8] sm:$0xff]
  %v1272 = vld [vmem:[%s0 + $0xe0] sm:$0xff]
  %v1273 = vld [vmem:[%s0 + $0xe8] sm:$0xff]
  %v1274 = vld [vmem:[%s0 + $0xf0] sm:$0xff]
  %v1275 = vld [vmem:[%s0 + $0xf8] sm:$0xff]
  %1277 = vset.pattern.permute.xlu0 0
  %1278 = vperm.xlu0 %1277, %v1260
  %v1279 = vpop.permute.xlu0 %1278
  %1282 = vset.pattern.permute.xlu0 0
  %1283 = vperm.xlu0 %1282, %v1261
  %v1284 = vpop.permute.xlu0 %1283
  %1287 = vset.pattern.permute.xlu0 0
  %1288 = vperm.xlu0 %1287, %v1262
  %v1289 = vpop.permute.xlu0 %1288
  %1292 = vset.pattern.permute.xlu0 0
  %1293 = vperm.xlu0 %1292, %v1263
  %v1294 = vpop.permute.xlu0 %1293
  %1297 = vset.pattern.permute.xlu0 0
  %1298 = vperm.xlu0 %1297, %v1264
  %v1299 = vpop.permute.xlu0 %1298
  %1302 = vset.pattern.permute.xlu0 0
  %1303 = vperm.xlu0 %1302, %v1265
  %v1304 = vpop.permute.xlu0 %1303
  %1307 = vset.pattern.permute.xlu0 0
  %1308 = vperm.xlu0 %1307, %v1266
  %v1309 = vpop.permute.xlu0 %1308
  %1312 = vset.pattern.permute.xlu0 0
  %1313 = vperm.xlu0 %1312, %v1267
  %v1314 = vpop.permute.xlu0 %1313
  %1317 = vset.pattern.permute.xlu0 0
  %1318 = vperm.xlu0 %1317, %v1268
  %v1319 = vpop.permute.xlu0 %1318
  %1322 = vset.pattern.permute.xlu0 0
  %1323 = vperm.xlu0 %1322, %v1269
  %v1324 = vpop.permute.xlu0 %1323
  %1327 = vset.pattern.permute.xlu0 0
  %1328 = vperm.xlu0 %1327, %v1270
  %v1329 = vpop.permute.xlu0 %1328
  %1332 = vset.pattern.permute.xlu0 0
  %1333 = vperm.xlu0 %1332, %v1271
  %v1334 = vpop.permute.xlu0 %1333
  %1337 = vset.pattern.permute.xlu0 0
  %1338 = vperm.xlu0 %1337, %v1272
  %v1339 = vpop.permute.xlu0 %1338
  %1342 = vset.pattern.permute.xlu0 0
  %1343 = vperm.xlu0 %1342, %v1273
  %v1344 = vpop.permute.xlu0 %1343
  %1347 = vset.pattern.permute.xlu0 0
  %1348 = vperm.xlu0 %1347, %v1274
  %v1349 = vpop.permute.xlu0 %1348
  %1352 = vset.pattern.permute.xlu0 0
  %1353 = vperm.xlu0 %1352, %v1275
  %v1354 = vpop.permute.xlu0 %1353
  %v1356 = vmul.f32 %v1279, %v119
  %v1357 = vmul.f32 %v1284, %v119
  %v1358 = vmul.f32 %v1289, %v119
  %v1359 = vmul.f32 %v1294, %v119
  %v1360 = vmul.f32 %v1299, %v119
  %v1361 = vmul.f32 %v1304, %v119
  %v1362 = vmul.f32 %v1309, %v119
  %v1363 = vmul.f32 %v1314, %v119
  %v1364 = vmul.f32 %v1319, %v119
  %v1365 = vmul.f32 %v1324, %v119
  %v1366 = vmul.f32 %v1329, %v119
  %v1367 = vmul.f32 %v1334, %v119
  %v1368 = vmul.f32 %v1339, %v119
  %v1369 = vmul.f32 %v1344, %v119
  %v1370 = vmul.f32 %v1349, %v119
  %v1371 = vmul.f32 %v1354, %v119
  %1372 = vset.pattern.permute.xlu0 1
  %1373 = vperm.xlu0 %1372, %v1260
  %v1374 = vpop.permute.xlu0 %1373
  %1376 = vset.pattern.permute.xlu0 1
  %1377 = vperm.xlu0 %1376, %v1261
  %v1378 = vpop.permute.xlu0 %1377
  %1380 = vset.pattern.permute.xlu0 1
  %1381 = vperm.xlu0 %1380, %v1262
  %v1382 = vpop.permute.xlu0 %1381
  %1384 = vset.pattern.permute.xlu0 1
  %1385 = vperm.xlu0 %1384, %v1263
  %v1386 = vpop.permute.xlu0 %1385
  %1388 = vset.pattern.permute.xlu0 1
  %1389 = vperm.xlu0 %1388, %v1264
  %v1390 = vpop.permute.xlu0 %1389
  %1392 = vset.pattern.permute.xlu0 1
  %1393 = vperm.xlu0 %1392, %v1265
  %v1394 = vpop.permute.xlu0 %1393
  %1396 = vset.pattern.permute.xlu0 1
  %1397 = vperm.xlu0 %1396, %v1266
  %v1398 = vpop.permute.xlu0 %1397
  %1400 = vset.pattern.permute.xlu0 1
  %1401 = vperm.xlu0 %1400, %v1267
  %v1402 = vpop.permute.xlu0 %1401
  %1404 = vset.pattern.permute.xlu0 1
  %1405 = vperm.xlu0 %1404, %v1268
  %v1406 = vpop.permute.xlu0 %1405
  %1408 = vset.pattern.permute.xlu0 1
  %1409 = vperm.xlu0 %1408, %v1269
  %v1410 = vpop.permute.xlu0 %1409
  %1412 = vset.pattern.permute.xlu0 1
  %1413 = vperm.xlu0 %1412, %v1270
  %v1414 = vpop.permute.xlu0 %1413
  %1416 = vset.pattern.permute.xlu0 1
  %1417 = vperm.xlu0 %1416, %v1271
  %v1418 = vpop.permute.xlu0 %1417
  %1420 = vset.pattern.permute.xlu0 1
  %1421 = vperm.xlu0 %1420, %v1272
  %v1422 = vpop.permute.xlu0 %1421
  %1424 = vset.pattern.permute.xlu0 1
  %1425 = vperm.xlu0 %1424, %v1273
  %v1426 = vpop.permute.xlu0 %1425
  %1428 = vset.pattern.permute.xlu0 1
  %1429 = vperm.xlu0 %1428, %v1274
  %v1430 = vpop.permute.xlu0 %1429
  %1432 = vset.pattern.permute.xlu0 1
  %1433 = vperm.xlu0 %1432, %v1275
  %v1434 = vpop.permute.xlu0 %1433
  %v1436 = vmul.f32 %v1374, %v203
  %v1437 = vmul.f32 %v1378, %v203
  %v1438 = vmul.f32 %v1382, %v203
  %v1439 = vmul.f32 %v1386, %v203
  %v1440 = vmul.f32 %v1390, %v203
  %v1441 = vmul.f32 %v1394, %v203
  %v1442 = vmul.f32 %v1398, %v203
  %v1443 = vmul.f32 %v1402, %v203
  %v1444 = vmul.f32 %v1406, %v203
  %v1445 = vmul.f32 %v1410, %v203
  %v1446 = vmul.f32 %v1414, %v203
  %v1447 = vmul.f32 %v1418, %v203
  %v1448 = vmul.f32 %v1422, %v203
  %v1449 = vmul.f32 %v1426, %v203
  %v1450 = vmul.f32 %v1430, %v203
  %v1451 = vmul.f32 %v1434, %v203
  %v1452 = vadd.f32 %v1356, %v1436
  %v1453 = vadd.f32 %v1357, %v1437
  %v1454 = vadd.f32 %v1358, %v1438
  %v1455 = vadd.f32 %v1359, %v1439
  %v1456 = vadd.f32 %v1360, %v1440
  %v1457 = vadd.f32 %v1361, %v1441
  %v1458 = vadd.f32 %v1362, %v1442
  %v1459 = vadd.f32 %v1363, %v1443
  %v1460 = vadd.f32 %v1364, %v1444
  %v1461 = vadd.f32 %v1365, %v1445
  %v1462 = vadd.f32 %v1366, %v1446
  %v1463 = vadd.f32 %v1367, %v1447
  %v1464 = vadd.f32 %v1368, %v1448
  %v1465 = vadd.f32 %v1369, %v1449
  %v1466 = vadd.f32 %v1370, %v1450
  %v1467 = vadd.f32 %v1371, %v1451
  %v1468 = vadd.f32 %v1452, %v240
  %v1469 = vadd.f32 %v1453, %v240
  %v1470 = vadd.f32 %v1454, %v240
  %v1471 = vadd.f32 %v1455, %v240
  %v1472 = vadd.f32 %v1456, %v240
  %v1473 = vadd.f32 %v1457, %v240
  %v1474 = vadd.f32 %v1458, %v240
  %v1475 = vadd.f32 %v1459, %v240
  %v1476 = vadd.f32 %v1460, %v240
  %v1477 = vadd.f32 %v1461, %v240
  %v1478 = vadd.f32 %v1462, %v240
  %v1479 = vadd.f32 %v1463, %v240
  %v1480 = vadd.f32 %v1464, %v240
  %v1481 = vadd.f32 %v1465, %v240
  %v1482 = vadd.f32 %v1466, %v240
  %v1483 = vadd.f32 %v1467, %v240
  %v1484 = vtanh.pop %v1468
  %v1485 = vtanh.pop %v1469
  %v1486 = vtanh.pop %v1470
  %v1487 = vtanh.pop %v1471
  %v1488 = vtanh.pop %v1472
  %v1489 = vtanh.pop %v1473
  %v1490 = vtanh.pop %v1474
  %v1491 = vtanh.pop %v1475
  %v1492 = vtanh.pop %v1476
  %v1493 = vtanh.pop %v1477
  %v1494 = vtanh.pop %v1478
  %v1495 = vtanh.pop %v1479
  %v1496 = vtanh.pop %v1480
  %v1497 = vtanh.pop %v1481
  %v1498 = vtanh.pop %v1482
  %v1499 = vtanh.pop %v1483
  %v1500 = vpack.c.bf16 %v1485, %v1484
  %v1501 = vpack.c.bf16 %v1487, %v1486
  %v1502 = vpack.c.bf16 %v1489, %v1488
  %v1503 = vpack.c.bf16 %v1491, %v1490
  %v1504 = vpack.c.bf16 %v1493, %v1492
  %v1505 = vpack.c.bf16 %v1495, %v1494
  %v1506 = vpack.c.bf16 %v1497, %v1496
  %v1507 = vpack.c.bf16 %v1499, %v1498
  %v1508 = vld [vmem:[%s3] sm:$0xf]
  %v1509 = vld [vmem:[%s3 + $0x4] sm:$0xf]
  %v1510 = vld [vmem:[%s3 + $0x8] sm:$0xf]
  %v1511 = vld [vmem:[%s3 + $0xc] sm:$0xf]
  %v1512 = vld [vmem:[%s3 + $0x10] sm:$0xf]
  %v1513 = vld [vmem:[%s3 + $0x14] sm:$0xf]
  %v1514 = vld [vmem:[%s3 + $0x18] sm:$0xf]
  %v1515 = vld [vmem:[%s3 + $0x1c] sm:$0xf]
  %v1516 = vld [vmem:[%s3 + $0x20] sm:$0xf]
  %v1517 = vld [vmem:[%s3 + $0x24] sm:$0xf]
  %v1518 = vld [vmem:[%s3 + $0x28] sm:$0xf]
  %v1519 = vld [vmem:[%s3 + $0x2c] sm:$0xf]
  %v1520 = vld [vmem:[%s3 + $0x30] sm:$0xf]
  %v1521 = vld [vmem:[%s3 + $0x34] sm:$0xf]
  %v1522 = vld [vmem:[%s3 + $0x38] sm:$0xf]
  %v1523 = vld [vmem:[%s3 + $0x3c] sm:$0xf]
  %v1524 = vld [vmem:[%s298] sm:$0x1]
  %v1526 = vlaneseq
  %v1527 = vshrl.u32 %v1526, 7
  %v1528 = vsub.s32 0, %v1527
  %v1529 = vrot.slane %v1524, %v1528
  %v1547 = vunpack.c.l.b16 %v1508
  %v1548 = vunpack.c.l.b16 %v1509
  %v1549 = vunpack.c.l.b16 %v1510
  %v1550 = vunpack.c.l.b16 %v1511
  %v1551 = vunpack.c.l.b16 %v1512
  %v1552 = vunpack.c.l.b16 %v1513
  %v1553 = vunpack.c.l.b16 %v1514
  %v1554 = vunpack.c.l.b16 %v1515
  %v1555 = vunpack.c.l.b16 %v1516
  %v1556 = vunpack.c.l.b16 %v1517
  %v1557 = vunpack.c.l.b16 %v1518
  %v1558 = vunpack.c.l.b16 %v1519
  %v1559 = vunpack.c.l.b16 %v1520
  %v1560 = vunpack.c.l.b16 %v1521
  %v1561 = vunpack.c.l.b16 %v1522
  %v1562 = vunpack.c.l.b16 %v1523
  %v1563 = vpack.c.b16 %v1548, %v1547
  %v1564 = vpack.c.b16 %v1550, %v1549
  %v1565 = vpack.c.b16 %v1552, %v1551
  %v1566 = vpack.c.b16 %v1554, %v1553
  %v1567 = vpack.c.b16 %v1556, %v1555
  %v1568 = vpack.c.b16 %v1558, %v1557
  %v1569 = vpack.c.b16 %v1560, %v1559
  %v1570 = vpack.c.b16 %v1562, %v1561
  %1579 = vmatprep.subr.bf16.mxu0 0
  %1580 = vmatpush1.bf16.msra.mxu0 %v1563
  %1581 = vmatprep.subr.bf16.mxu0 0
  %1582 = vmatpush1.bf16.msra.mxu0 %v1564
  %1583 = vmatprep.subr.bf16.mxu0 0
  %1584 = vmatpush1.bf16.msra.mxu0 %v1565
  %1585 = vmatprep.subr.bf16.mxu0 0
  %1586 = vmatpush1.bf16.msra.mxu0 %v1566
  %1587 = vmatprep.subr.bf16.mxu0 0
  %1588 = vmatpush1.bf16.msra.mxu0 %v1567
  %1589 = vmatprep.subr.bf16.mxu0 0
  %1590 = vmatpush1.bf16.msra.mxu0 %v1568
  %1591 = vmatprep.subr.bf16.mxu0 0
  %1592 = vmatpush1.bf16.msra.mxu0 %v1569
  %1593 = vmatprep.subr.bf16.mxu0 0
  %1594 = vmatpush1.bf16.msra.mxu0 %v1570
  %1595 = vmatprep.subr.bf16.mxu0 0
  %1596 = vmatpush1.bf16.msra.mxu0 0
  %1597 = vmatprep.subr.bf16.mxu0 0
  %1598 = vmatpush1.bf16.msra.mxu0 0
  %1599 = vmatprep.subr.bf16.mxu0 0
  %1600 = vmatpush1.bf16.msra.mxu0 0
  %1601 = vmatprep.subr.bf16.mxu0 0
  %1602 = vmatpush1.bf16.msra.mxu0 0
  %1603 = vmatprep.subr.bf16.mxu0 0
  %1604 = vmatpush1.bf16.msra.mxu0 0
  %1605 = vmatprep.subr.bf16.mxu0 0
  %1606 = vmatpush1.bf16.msra.mxu0 0
  %1607 = vmatprep.subr.bf16.mxu0 0
  %1608 = vmatpush1.bf16.msra.mxu0 0
  %1609 = vmatprep.subr.bf16.mxu0 0
  %1610 = vmatpush1.bf16.msra.mxu0 0
  %1611 = vmatprep.mubr.bf16.mxu0 0
  %1612 = vmatmul.mubr.bf16.gmra.mrb[0].mxu0 %v1500
  %v1613 = vpop.f32.mrb[0].mxu0
  %v1614 = vadd.f32 %v1529, %v1613
  %v1615 = vpop.f32.mrb[0].mxu0
  %v1616 = vpop.f32.mrb[0].mxu0
  %v1617 = vadd.f32 %v1529, %v1616
  %v1618 = vpop.f32.mrb[0].mxu0
  %1619 = vmatprep.mubr.bf16.mxu0 0
  %1620 = vmatmul.mubr.bf16.gmra.mrb[0].mxu0 %v1501
  %v1621 = vpop.f32.mrb[0].mxu0
  %v1622 = vadd.f32 %v1529, %v1621
  %v1623 = vpop.f32.mrb[0].mxu0
  %v1624 = vpop.f32.mrb[0].mxu0
  %v1625 = vadd.f32 %v1529, %v1624
  %v1626 = vpop.f32.mrb[0].mxu0
  %1627 = vmatprep.mubr.bf16.mxu0 0
  %1628 = vmatmul.mubr.bf16.gmra.mrb[0].mxu0 %v1502
  %v1629 = vpop.f32.mrb[0].mxu0
  %v1630 = vadd.f32 %v1529, %v1629
  %v1631 = vpop.f32.mrb[0].mxu0
  %v1632 = vpop.f32.mrb[0].mxu0
  %v1633 = vadd.f32 %v1529, %v1632
  %v1634 = vpop.f32.mrb[0].mxu0
  %1635 = vmatprep.mubr.bf16.mxu0 0
  %1636 = vmatmul.mubr.bf16.gmra.mrb[0].mxu0 %v1503
  %v1637 = vpop.f32.mrb[0].mxu0
  %v1638 = vadd.f32 %v1529, %v1637
  %v1639 = vpop.f32.mrb[0].mxu0
  %v1640 = vpop.f32.mrb[0].mxu0
  %v1641 = vadd.f32 %v1529, %v1640
  %v1642 = vpop.f32.mrb[0].mxu0
  %1643 = vmatprep.mubr.bf16.mxu0 0
  %1644 = vmatmul.mubr.bf16.gmra.mrb[0].mxu0 %v1504
  %v1645 = vpop.f32.mrb[0].mxu0
  %v1646 = vadd.f32 %v1529, %v1645
  %v1647 = vpop.f32.mrb[0].mxu0
  %v1648 = vpop.f32.mrb[0].mxu0
  %v1649 = vadd.f32 %v1529, %v1648
  %v1650 = vpop.f32.mrb[0].mxu0
  %1651 = vmatprep.mubr.bf16.mxu0 0
  %1652 = vmatmul.mubr.bf16.gmra.mrb[0].mxu0 %v1505
  %v1653 = vpop.f32.mrb[0].mxu0
  %v1654 = vadd.f32 %v1529, %v1653
  %v1655 = vpop.f32.mrb[0].mxu0
  %v1656 = vpop.f32.mrb[0].mxu0
  %v1657 = vadd.f32 %v1529, %v1656
  %v1658 = vpop.f32.mrb[0].mxu0
  %1659 = vmatprep.mubr.bf16.mxu0 0
  %1660 = vmatmul.mubr.bf16.gmra.mrb[0].mxu0 %v1506
  %v1661 = vpop.f32.mrb[0].mxu0
  %v1662 = vadd.f32 %v1529, %v1661
  %v1663 = vpop.f32.mrb[0].mxu0
  %v1664 = vpop.f32.mrb[0].mxu0
  %v1665 = vadd.f32 %v1529, %v1664
  %v1666 = vpop.f32.mrb[0].mxu0
  %1667 = vmatprep.mubr.bf16.mxu0 0
  %1668 = vmatmul.mubr.bf16.gmra.mrb[0].mxu0 %v1507
  %v1669 = vpop.f32.mrb[0].mxu0
  %v1670 = vadd.f32 %v1529, %v1669
  %v1671 = vpop.f32.mrb[0].mxu0
  %v1672 = vpop.f32.mrb[0].mxu0
  %v1673 = vadd.f32 %v1529, %v1672
  %v1674 = vpop.f32.mrb[0].mxu0
  %1675 = vdwg.mxu0
  %v1676 = vtanh.pop %v1614
  %v1677 = vtanh.pop %v1617
  %v1678 = vtanh.pop %v1622
  %v1679 = vtanh.pop %v1625
  %v1680 = vtanh.pop %v1630
  %v1681 = vtanh.pop %v1633
  %v1682 = vtanh.pop %v1638
  %v1683 = vtanh.pop %v1641
  %v1684 = vtanh.pop %v1646
  %v1685 = vtanh.pop %v1649
  %v1686 = vtanh.pop %v1654
  %v1687 = vtanh.pop %v1657
  %v1688 = vtanh.pop %v1662
  %v1689 = vtanh.pop %v1665
  %v1690 = vtanh.pop %v1670
  %v1691 = vtanh.pop %v1673
  %v1692 = vpack.c.bf16 %v1677, %v1676
  %v1693 = vpack.c.bf16 %v1679, %v1678
  %v1694 = vpack.c.bf16 %v1681, %v1680
  %v1695 = vpack.c.bf16 %v1683, %v1682
  %v1696 = vpack.c.bf16 %v1685, %v1684
  %v1697 = vpack.c.bf16 %v1687, %v1686
  %v1698 = vpack.c.bf16 %v1689, %v1688
  %v1699 = vpack.c.bf16 %v1691, %v1690
  %v1700 = vld [vmem:[%s475] sm:$0xf]
  %v1701 = vld [vmem:[%s475 + $0x4] sm:$0xf]
  %v1702 = vld [vmem:[%s475 + $0x8] sm:$0xf]
  %v1703 = vld [vmem:[%s475 + $0xc] sm:$0xf]
  %v1704 = vld [vmem:[%s475 + $0x10] sm:$0xf]
  %v1705 = vld [vmem:[%s475 + $0x14] sm:$0xf]
  %v1706 = vld [vmem:[%s475 + $0x18] sm:$0xf]
  %v1707 = vld [vmem:[%s475 + $0x1c] sm:$0xf]
  %v1708 = vld [vmem:[%s475 + $0x20] sm:$0xf]
  %v1709 = vld [vmem:[%s475 + $0x24] sm:$0xf]
  %v1710 = vld [vmem:[%s475 + $0x28] sm:$0xf]
  %v1711 = vld [vmem:[%s475 + $0x2c] sm:$0xf]
  %v1712 = vld [vmem:[%s475 + $0x30] sm:$0xf]
  %v1713 = vld [vmem:[%s475 + $0x34] sm:$0xf]
  %v1714 = vld [vmem:[%s475 + $0x38] sm:$0xf]
  %v1715 = vld [vmem:[%s475 + $0x3c] sm:$0xf]
  %v1716 = vld [vmem:[%s492] sm:$0x1]
  %v1718 = vlaneseq
  %v1719 = vshrl.u32 %v1718, 7
  %v1720 = vsub.s32 0, %v1719
  %v1721 = vrot.slane %v1716, %v1720
  %v1739 = vunpack.c.l.b16 %v1700
  %v1740 = vunpack.c.l.b16 %v1701
  %v1741 = vunpack.c.l.b16 %v1702
  %v1742 = vunpack.c.l.b16 %v1703
  %v1743 = vunpack.c.l.b16 %v1704
  %v1744 = vunpack.c.l.b16 %v1705
  %v1745 = vunpack.c.l.b16 %v1706
  %v1746 = vunpack.c.l.b16 %v1707
  %v1747 = vunpack.c.l.b16 %v1708
  %v1748 = vunpack.c.l.b16 %v1709
  %v1749 = vunpack.c.l.b16 %v1710
  %v1750 = vunpack.c.l.b16 %v1711
  %v1751 = vunpack.c.l.b16 %v1712
  %v1752 = vunpack.c.l.b16 %v1713
  %v1753 = vunpack.c.l.b16 %v1714
  %v1754 = vunpack.c.l.b16 %v1715
  %v1755 = vpack.c.b16 %v1740, %v1739
  %v1756 = vpack.c.b16 %v1742, %v1741
  %v1757 = vpack.c.b16 %v1744, %v1743
  %v1758 = vpack.c.b16 %v1746, %v1745
  %v1759 = vpack.c.b16 %v1748, %v1747
  %v1760 = vpack.c.b16 %v1750, %v1749
  %v1761 = vpack.c.b16 %v1752, %v1751
  %v1762 = vpack.c.b16 %v1754, %v1753
  %1771 = vmatprep.subr.bf16.mxu0 0
  %1772 = vmatpush1.bf16.msra.mxu0 %v1755
  %1773 = vmatprep.subr.bf16.mxu0 0
  %1774 = vmatpush1.bf16.msra.mxu0 %v1756
  %1775 = vmatprep.subr.bf16.mxu0 0
  %1776 = vmatpush1.bf16.msra.mxu0 %v1757
  %1777 = vmatprep.subr.bf16.mxu0 0
  %1778 = vmatpush1.bf16.msra.mxu0 %v1758
  %1779 = vmatprep.subr.bf16.mxu0 0
  %1780 = vmatpush1.bf16.msra.mxu0 %v1759
  %1781 = vmatprep.subr.bf16.mxu0 0
  %1782 = vmatpush1.bf16.msra.mxu0 %v1760
  %1783 = vmatprep.subr.bf16.mxu0 0
  %1784 = vmatpush1.bf16.msra.mxu0 %v1761
  %1785 = vmatprep.subr.bf16.mxu0 0
  %1786 = vmatpush1.bf16.msra.mxu0 %v1762
  %1787 = vmatprep.subr.bf16.mxu0 0
  %1788 = vmatpush1.bf16.msra.mxu0 0
  %1789 = vmatprep.subr.bf16.mxu0 0
  %1790 = vmatpush1.bf16.msra.mxu0 0
  %1791 = vmatprep.subr.bf16.mxu0 0
  %1792 = vmatpush1.bf16.msra.mxu0 0
  %1793 = vmatprep.subr.bf16.mxu0 0
  %1794 = vmatpush1.bf16.msra.mxu0 0
  %1795 = vmatprep.subr.bf16.mxu0 0
  %1796 = vmatpush1.bf16.msra.mxu0 0
  %1797 = vmatprep.subr.bf16.mxu0 0
  %1798 = vmatpush1.bf16.msra.mxu0 0
  %1799 = vmatprep.subr.bf16.mxu0 0
  %1800 = vmatpush1.bf16.msra.mxu0 0
  %1801 = vmatprep.subr.bf16.mxu0 0
  %1802 = vmatpush1.bf16.msra.mxu0 0
  %1803 = vmatprep.mubr.bf16.mxu0 0
  %1804 = vmatmul.mubr.bf16.gmra.mrb[0].mxu0 %v1692
  %v1805 = vpop.f32.mrb[0].mxu0
  %v1806 = vadd.f32 %v1721, %v1805
  %v1807 = vpop.f32.mrb[0].mxu0
  %v1808 = vpop.f32.mrb[0].mxu0
  %v1809 = vadd.f32 %v1721, %v1808
  %v1810 = vpop.f32.mrb[0].mxu0
  %1811 = vmatprep.mubr.bf16.mxu0 0
  %1812 = vmatmul.mubr.bf16.gmra.mrb[0].mxu0 %v1693
  %v1813 = vpop.f32.mrb[0].mxu0
  %v1814 = vadd.f32 %v1721, %v1813
  %v1815 = vpop.f32.mrb[0].mxu0
  %v1816 = vpop.f32.mrb[0].mxu0
  %v1817 = vadd.f32 %v1721, %v1816
  %v1818 = vpop.f32.mrb[0].mxu0
  %1819 = vmatprep.mubr.bf16.mxu0 0
  %1820 = vmatmul.mubr.bf16.gmra.mrb[0].mxu0 %v1694
  %v1821 = vpop.f32.mrb[0].mxu0
  %v1822 = vadd.f32 %v1721, %v1821
  %v1823 = vpop.f32.mrb[0].mxu0
  %v1824 = vpop.f32.mrb[0].mxu0
  %v1825 = vadd.f32 %v1721, %v1824
  %v1826 = vpop.f32.mrb[0].mxu0
  %1827 = vmatprep.mubr.bf16.mxu0 0
  %1828 = vmatmul.mubr.bf16.gmra.mrb[0].mxu0 %v1695
  %v1829 = vpop.f32.mrb[0].mxu0
  %v1830 = vadd.f32 %v1721, %v1829
  %v1831 = vpop.f32.mrb[0].mxu0
  %v1832 = vpop.f32.mrb[0].mxu0
  %v1833 = vadd.f32 %v1721, %v1832
  %v1834 = vpop.f32.mrb[0].mxu0
  %1835 = vmatprep.mubr.bf16.mxu0 0
  %1836 = vmatmul.mubr.bf16.gmra.mrb[0].mxu0 %v1696
  %v1837 = vpop.f32.mrb[0].mxu0
  %v1838 = vadd.f32 %v1721, %v1837
  %v1839 = vpop.f32.mrb[0].mxu0
  %v1840 = vpop.f32.mrb[0].mxu0
  %v1841 = vadd.f32 %v1721, %v1840
  %v1842 = vpop.f32.mrb[0].mxu0
  %1843 = vmatprep.mubr.bf16.mxu0 0
  %1844 = vmatmul.mubr.bf16.gmra.mrb[0].mxu0 %v1697
  %v1845 = vpop.f32.mrb[0].mxu0
  %v1846 = vadd.f32 %v1721, %v1845
  %v1847 = vpop.f32.mrb[0].mxu0
  %v1848 = vpop.f32.mrb[0].mxu0
  %v1849 = vadd.f32 %v1721, %v1848
  %v1850 = vpop.f32.mrb[0].mxu0
  %1851 = vmatprep.mubr.bf16.mxu0 0
  %1852 = vmatmul.mubr.bf16.gmra.mrb[0].mxu0 %v1698
  %v1853 = vpop.f32.mrb[0].mxu0
  %v1854 = vadd.f32 %v1721, %v1853
  %v1855 = vpop.f32.mrb[0].mxu0
  %v1856 = vpop.f32.mrb[0].mxu0
  %v1857 = vadd.f32 %v1721, %v1856
  %v1858 = vpop.f32.mrb[0].mxu0
  %1859 = vmatprep.mubr.bf16.mxu0 0
  %1860 = vmatmul.mubr.bf16.gmra.mrb[0].mxu0 %v1699
  %v1861 = vpop.f32.mrb[0].mxu0
  %v1862 = vadd.f32 %v1721, %v1861
  %v1863 = vpop.f32.mrb[0].mxu0
  %v1864 = vpop.f32.mrb[0].mxu0
  %v1865 = vadd.f32 %v1721, %v1864
  %v1866 = vpop.f32.mrb[0].mxu0
  %1867 = vdwg.mxu0
  %v1868 = vtanh.pop %v1806
  %v1869 = vtanh.pop %v1809
  %v1870 = vtanh.pop %v1814
  %v1871 = vtanh.pop %v1817
  %v1872 = vtanh.pop %v1822
  %v1873 = vtanh.pop %v1825
  %v1874 = vtanh.pop %v1830
  %v1875 = vtanh.pop %v1833
  %v1876 = vtanh.pop %v1838
  %v1877 = vtanh.pop %v1841
  %v1878 = vtanh.pop %v1846
  %v1879 = vtanh.pop %v1849
  %v1880 = vtanh.pop %v1854
  %v1881 = vtanh.pop %v1857
  %v1882 = vtanh.pop %v1862
  %v1883 = vtanh.pop %v1865
  %v1884 = vpack.c.bf16 %v1869, %v1868
  %v1885 = vpack.c.bf16 %v1871, %v1870
  %v1886 = vpack.c.bf16 %v1873, %v1872
  %v1887 = vpack.c.bf16 %v1875, %v1874
  %v1888 = vpack.c.bf16 %v1877, %v1876
  %v1889 = vpack.c.bf16 %v1879, %v1878
  %v1890 = vpack.c.bf16 %v1881, %v1880
  %v1891 = vpack.c.bf16 %v1883, %v1882
  %v1892 = vld [vmem:[%s669] sm:$0xf]
  %v1893 = vld [vmem:[%s669 + $0x4] sm:$0xf]
  %v1894 = vld [vmem:[%s669 + $0x8] sm:$0xf]
  %v1895 = vld [vmem:[%s669 + $0xc] sm:$0xf]
  %v1896 = vld [vmem:[%s669 + $0x10] sm:$0xf]
  %v1897 = vld [vmem:[%s669 + $0x14] sm:$0xf]
  %v1898 = vld [vmem:[%s669 + $0x18] sm:$0xf]
  %v1899 = vld [vmem:[%s669 + $0x1c] sm:$0xf]
  %v1900 = vld [vmem:[%s669 + $0x20] sm:$0xf]
  %v1901 = vld [vmem:[%s669 + $0x24] sm:$0xf]
  %v1902 = vld [vmem:[%s669 + $0x28] sm:$0xf]
  %v1903 = vld [vmem:[%s669 + $0x2c] sm:$0xf]
  %v1904 = vld [vmem:[%s669 + $0x30] sm:$0xf]
  %v1905 = vld [vmem:[%s669 + $0x34] sm:$0xf]
  %v1906 = vld [vmem:[%s669 + $0x38] sm:$0xf]
  %v1907 = vld [vmem:[%s669 + $0x3c] sm:$0xf]
  %v1908 = vld [vmem:[%s686] sm:$0x1]
  %v1910 = vlaneseq
  %v1911 = vshrl.u32 %v1910, 7
  %v1912 = vsub.s32 0, %v1911
  %v1913 = vrot.slane %v1908, %v1912
  %v1931 = vunpack.c.l.b16 %v1892
  %v1932 = vunpack.c.l.b16 %v1893
  %v1933 = vunpack.c.l.b16 %v1894
  %v1934 = vunpack.c.l.b16 %v1895
  %v1935 = vunpack.c.l.b16 %v1896
  %v1936 = vunpack.c.l.b16 %v1897
  %v1937 = vunpack.c.l.b16 %v1898
  %v1938 = vunpack.c.l.b16 %v1899
  %v1939 = vunpack.c.l.b16 %v1900
  %v1940 = vunpack.c.l.b16 %v1901
  %v1941 = vunpack.c.l.b16 %v1902
  %v1942 = vunpack.c.l.b16 %v1903
  %v1943 = vunpack.c.l.b16 %v1904
  %v1944 = vunpack.c.l.b16 %v1905
  %v1945 = vunpack.c.l.b16 %v1906
  %v1946 = vunpack.c.l.b16 %v1907
  %v1947 = vpack.c.b16 %v1932, %v1931
  %v1948 = vpack.c.b16 %v1934, %v1933
  %v1949 = vpack.c.b16 %v1936, %v1935
  %v1950 = vpack.c.b16 %v1938, %v1937
  %v1951 = vpack.c.b16 %v1940, %v1939
  %v1952 = vpack.c.b16 %v1942, %v1941
  %v1953 = vpack.c.b16 %v1944, %v1943
  %v1954 = vpack.c.b16 %v1946, %v1945
  %1963 = vmatprep.subr.bf16.mxu0 0
  %1964 = vmatpush1.bf16.msra.mxu0 %v1947
  %1965 = vmatprep.subr.bf16.mxu0 0
  %1966 = vmatpush1.bf16.msra.mxu0 %v1948
  %1967 = vmatprep.subr.bf16.mxu0 0
  %1968 = vmatpush1.bf16.msra.mxu0 %v1949
  %1969 = vmatprep.subr.bf16.mxu0 0
  %1970 = vmatpush1.bf16.msra.mxu0 %v1950
  %1971 = vmatprep.subr.bf16.mxu0 0
  %1972 = vmatpush1.bf16.msra.mxu0 %v1951
  %1973 = vmatprep.subr.bf16.mxu0 0
  %1974 = vmatpush1.bf16.msra.mxu0 %v1952
  %1975 = vmatprep.subr.bf16.mxu0 0
  %1976 = vmatpush1.bf16.msra.mxu0 %v1953
  %1977 = vmatprep.subr.bf16.mxu0 0
  %1978 = vmatpush1.bf16.msra.mxu0 %v1954
  %1979 = vmatprep.subr.bf16.mxu0 0
  %1980 = vmatpush1.bf16.msra.mxu0 0
  %1981 = vmatprep.subr.bf16.mxu0 0
  %1982 = vmatpush1.bf16.msra.mxu0 0
  %1983 = vmatprep.subr.bf16.mxu0 0
  %1984 = vmatpush1.bf16.msra.mxu0 0
  %1985 = vmatprep.subr.bf16.mxu0 0
  %1986 = vmatpush1.bf16.msra.mxu0 0
  %1987 = vmatprep.subr.bf16.mxu0 0
  %1988 = vmatpush1.bf16.msra.mxu0 0
  %1989 = vmatprep.subr.bf16.mxu0 0
  %1990 = vmatpush1.bf16.msra.mxu0 0
  %1991 = vmatprep.subr.bf16.mxu0 0
  %1992 = vmatpush1.bf16.msra.mxu0 0
  %1993 = vmatprep.subr.bf16.mxu0 0
  %1994 = vmatpush1.bf16.msra.mxu0 0
  %1995 = vmatprep.mubr.bf16.mxu0 0
  %1996 = vmatmul.mubr.bf16.gmra.mrb[0].mxu0 %v1884
  %v1997 = vpop.f32.mrb[0].mxu0
  %v1998 = vadd.f32 %v1913, %v1997
  %v1999 = vpop.f32.mrb[0].mxu0
  %v2000 = vpop.f32.mrb[0].mxu0
  %v2001 = vadd.f32 %v1913, %v2000
  %v2002 = vpop.f32.mrb[0].mxu0
  %2003 = vmatprep.mubr.bf16.mxu0 0
  %2004 = vmatmul.mubr.bf16.gmra.mrb[0].mxu0 %v1885
  %v2005 = vpop.f32.mrb[0].mxu0
  %v2006 = vadd.f32 %v1913, %v2005
  %v2007 = vpop.f32.mrb[0].mxu0
  %v2008 = vpop.f32.mrb[0].mxu0
  %v2009 = vadd.f32 %v1913, %v2008
  %v2010 = vpop.f32.mrb[0].mxu0
  %2011 = vmatprep.mubr.bf16.mxu0 0
  %2012 = vmatmul.mubr.bf16.gmra.mrb[0].mxu0 %v1886
  %v2013 = vpop.f32.mrb[0].mxu0
  %v2014 = vadd.f32 %v1913, %v2013
  %v2015 = vpop.f32.mrb[0].mxu0
  %v2016 = vpop.f32.mrb[0].mxu0
  %v2017 = vadd.f32 %v1913, %v2016
  %v2018 = vpop.f32.mrb[0].mxu0
  %2019 = vmatprep.mubr.bf16.mxu0 0
  %2020 = vmatmul.mubr.bf16.gmra.mrb[0].mxu0 %v1887
  %v2021 = vpop.f32.mrb[0].mxu0
  %v2022 = vadd.f32 %v1913, %v2021
  %v2023 = vpop.f32.mrb[0].mxu0
  %v2024 = vpop.f32.mrb[0].mxu0
  %v2025 = vadd.f32 %v1913, %v2024
  %v2026 = vpop.f32.mrb[0].mxu0
  %2027 = vmatprep.mubr.bf16.mxu0 0
  %2028 = vmatmul.mubr.bf16.gmra.mrb[0].mxu0 %v1888
  %v2029 = vpop.f32.mrb[0].mxu0
  %v2030 = vadd.f32 %v1913, %v2029
  %v2031 = vpop.f32.mrb[0].mxu0
  %v2032 = vpop.f32.mrb[0].mxu0
  %v2033 = vadd.f32 %v1913, %v2032
  %v2034 = vpop.f32.mrb[0].mxu0
  %2035 = vmatprep.mubr.bf16.mxu0 0
  %2036 = vmatmul.mubr.bf16.gmra.mrb[0].mxu0 %v1889
  %v2037 = vpop.f32.mrb[0].mxu0
  %v2038 = vadd.f32 %v1913, %v2037
  %v2039 = vpop.f32.mrb[0].mxu0
  %v2040 = vpop.f32.mrb[0].mxu0
  %v2041 = vadd.f32 %v1913, %v2040
  %v2042 = vpop.f32.mrb[0].mxu0
  %2043 = vmatprep.mubr.bf16.mxu0 0
  %2044 = vmatmul.mubr.bf16.gmra.mrb[0].mxu0 %v1890
  %v2045 = vpop.f32.mrb[0].mxu0
  %v2046 = vadd.f32 %v1913, %v2045
  %v2047 = vpop.f32.mrb[0].mxu0
  %v2048 = vpop.f32.mrb[0].mxu0
  %v2049 = vadd.f32 %v1913, %v2048
  %v2050 = vpop.f32.mrb[0].mxu0
  %2051 = vmatprep.mubr.bf16.mxu0 0
  %2052 = vmatmul.mubr.bf16.gmra.mrb[0].mxu0 %v1891
  %v2053 = vpop.f32.mrb[0].mxu0
  %v2054 = vadd.f32 %v1913, %v2053
  %v2055 = vpop.f32.mrb[0].mxu0
  %v2056 = vpop.f32.mrb[0].mxu0
  %v2057 = vadd.f32 %v1913, %v2056
  %v2058 = vpop.f32.mrb[0].mxu0
  %2059 = vdwg.mxu0
  %v2060 = vtanh.pop %v1998
  %v2061 = vtanh.pop %v2001
  %v2062 = vtanh.pop %v2006
  %v2063 = vtanh.pop %v2009
  %v2064 = vtanh.pop %v2014
  %v2065 = vtanh.pop %v2017
  %v2066 = vtanh.pop %v2022
  %v2067 = vtanh.pop %v2025
  %v2068 = vtanh.pop %v2030
  %v2069 = vtanh.pop %v2033
  %v2070 = vtanh.pop %v2038
  %v2071 = vtanh.pop %v2041
  %v2072 = vtanh.pop %v2046
  %v2073 = vtanh.pop %v2049
  %v2074 = vtanh.pop %v2054
  %v2075 = vtanh.pop %v2057
  %v2076 = vpack.c.bf16 %v2061, %v2060
  %v2077 = vpack.c.bf16 %v2063, %v2062
  %v2078 = vpack.c.bf16 %v2065, %v2064
  %v2079 = vpack.c.bf16 %v2067, %v2066
  %v2080 = vpack.c.bf16 %v2069, %v2068
  %v2081 = vpack.c.bf16 %v2071, %v2070
  %v2082 = vpack.c.bf16 %v2073, %v2072
  %v2083 = vpack.c.bf16 %v2075, %v2074
  %v2084 = vld [vmem:[%s863] sm:$0xf]
  %v2085 = vld [vmem:[%s863 + $0x4] sm:$0xf]
  %v2086 = vld [vmem:[%s863 + $0x8] sm:$0xf]
  %v2087 = vld [vmem:[%s863 + $0xc] sm:$0xf]
  %v2088 = vld [vmem:[%s863 + $0x10] sm:$0xf]
  %v2089 = vld [vmem:[%s863 + $0x14] sm:$0xf]
  %v2090 = vld [vmem:[%s863 + $0x18] sm:$0xf]
  %v2091 = vld [vmem:[%s863 + $0x1c] sm:$0xf]
  %v2092 = vld [vmem:[%s863 + $0x20] sm:$0xf]
  %v2093 = vld [vmem:[%s863 + $0x24] sm:$0xf]
  %v2094 = vld [vmem:[%s863 + $0x28] sm:$0xf]
  %v2095 = vld [vmem:[%s863 + $0x2c] sm:$0xf]
  %v2096 = vld [vmem:[%s863 + $0x30] sm:$0xf]
  %v2097 = vld [vmem:[%s863 + $0x34] sm:$0xf]
  %v2098 = vld [vmem:[%s863 + $0x38] sm:$0xf]
  %v2099 = vld [vmem:[%s863 + $0x3c] sm:$0xf]
  %v2100 = vld [vmem:[%s880] sm:$0x1]
  %v2102 = vlaneseq
  %v2103 = vshrl.u32 %v2102, 7
  %v2104 = vsub.s32 0, %v2103
  %v2105 = vrot.slane %v2100, %v2104
  %v2123 = vunpack.c.l.b16 %v2084
  %v2124 = vunpack.c.l.b16 %v2085
  %v2125 = vunpack.c.l.b16 %v2086
  %v2126 = vunpack.c.l.b16 %v2087
  %v2127 = vunpack.c.l.b16 %v2088
  %v2128 = vunpack.c.l.b16 %v2089
  %v2129 = vunpack.c.l.b16 %v2090
  %v2130 = vunpack.c.l.b16 %v2091
  %v2131 = vunpack.c.l.b16 %v2092
  %v2132 = vunpack.c.l.b16 %v2093
  %v2133 = vunpack.c.l.b16 %v2094
  %v2134 = vunpack.c.l.b16 %v2095
  %v2135 = vunpack.c.l.b16 %v2096
  %v2136 = vunpack.c.l.b16 %v2097
  %v2137 = vunpack.c.l.b16 %v2098
  %v2138 = vunpack.c.l.b16 %v2099
  %v2139 = vpack.c.b16 %v2124, %v2123
  %v2140 = vpack.c.b16 %v2126, %v2125
  %v2141 = vpack.c.b16 %v2128, %v2127
  %v2142 = vpack.c.b16 %v2130, %v2129
  %v2143 = vpack.c.b16 %v2132, %v2131
  %v2144 = vpack.c.b16 %v2134, %v2133
  %v2145 = vpack.c.b16 %v2136, %v2135
  %v2146 = vpack.c.b16 %v2138, %v2137
  %2155 = vmatprep.subr.bf16.mxu0 0
  %2156 = vmatpush1.bf16.msra.mxu0 %v2139
  %2157 = vmatprep.subr.bf16.mxu0 0
  %2158 = vmatpush1.bf16.msra.mxu0 %v2140
  %2159 = vmatprep.subr.bf16.mxu0 0
  %2160 = vmatpush1.bf16.msra.mxu0 %v2141
  %2161 = vmatprep.subr.bf16.mxu0 0
  %2162 = vmatpush1.bf16.msra.mxu0 %v2142
  %2163 = vmatprep.subr.bf16.mxu0 0
  %2164 = vmatpush1.bf16.msra.mxu0 %v2143
  %2165 = vmatprep.subr.bf16.mxu0 0
  %2166 = vmatpush1.bf16.msra.mxu0 %v2144
  %2167 = vmatprep.subr.bf16.mxu0 0
  %2168 = vmatpush1.bf16.msra.mxu0 %v2145
  %2169 = vmatprep.subr.bf16.mxu0 0
  %2170 = vmatpush1.bf16.msra.mxu0 %v2146
  %2171 = vmatprep.subr.bf16.mxu0 0
  %2172 = vmatpush1.bf16.msra.mxu0 0
  %2173 = vmatprep.subr.bf16.mxu0 0
  %2174 = vmatpush1.bf16.msra.mxu0 0
  %2175 = vmatprep.subr.bf16.mxu0 0
  %2176 = vmatpush1.bf16.msra.mxu0 0
  %2177 = vmatprep.subr.bf16.mxu0 0
  %2178 = vmatpush1.bf16.msra.mxu0 0
  %2179 = vmatprep.subr.bf16.mxu0 0
  %2180 = vmatpush1.bf16.msra.mxu0 0
  %2181 = vmatprep.subr.bf16.mxu0 0
  %2182 = vmatpush1.bf16.msra.mxu0 0
  %2183 = vmatprep.subr.bf16.mxu0 0
  %2184 = vmatpush1.bf16.msra.mxu0 0
  %2185 = vmatprep.subr.bf16.mxu0 0
  %2186 = vmatpush1.bf16.msra.mxu0 0
  %2187 = vmatprep.mubr.bf16.mxu0 0
  %2188 = vmatmul.mubr.bf16.gmra.mrb[0].mxu0 %v2076
  %v2189 = vpop.f32.mrb[0].mxu0
  %v2190 = vadd.f32 %v2105, %v2189
  %v2191 = vpop.f32.mrb[0].mxu0
  %v2192 = vpop.f32.mrb[0].mxu0
  %v2193 = vadd.f32 %v2105, %v2192
  %v2194 = vpop.f32.mrb[0].mxu0
  %2195 = vmatprep.mubr.bf16.mxu0 0
  %2196 = vmatmul.mubr.bf16.gmra.mrb[0].mxu0 %v2077
  %v2197 = vpop.f32.mrb[0].mxu0
  %v2198 = vadd.f32 %v2105, %v2197
  %v2199 = vpop.f32.mrb[0].mxu0
  %v2200 = vpop.f32.mrb[0].mxu0
  %v2201 = vadd.f32 %v2105, %v2200
  %v2202 = vpop.f32.mrb[0].mxu0
  %2203 = vmatprep.mubr.bf16.mxu0 0
  %2204 = vmatmul.mubr.bf16.gmra.mrb[0].mxu0 %v2078
  %v2205 = vpop.f32.mrb[0].mxu0
  %v2206 = vadd.f32 %v2105, %v2205
  %v2207 = vpop.f32.mrb[0].mxu0
  %v2208 = vpop.f32.mrb[0].mxu0
  %v2209 = vadd.f32 %v2105, %v2208
  %v2210 = vpop.f32.mrb[0].mxu0
  %2211 = vmatprep.mubr.bf16.mxu0 0
  %2212 = vmatmul.mubr.bf16.gmra.mrb[0].mxu0 %v2079
  %v2213 = vpop.f32.mrb[0].mxu0
  %v2214 = vadd.f32 %v2105, %v2213
  %v2215 = vpop.f32.mrb[0].mxu0
  %v2216 = vpop.f32.mrb[0].mxu0
  %v2217 = vadd.f32 %v2105, %v2216
  %v2218 = vpop.f32.mrb[0].mxu0
  %2219 = vmatprep.mubr.bf16.mxu0 0
  %2220 = vmatmul.mubr.bf16.gmra.mrb[0].mxu0 %v2080
  %v2221 = vpop.f32.mrb[0].mxu0
  %v2222 = vadd.f32 %v2105, %v2221
  %v2223 = vpop.f32.mrb[0].mxu0
  %v2224 = vpop.f32.mrb[0].mxu0
  %v2225 = vadd.f32 %v2105, %v2224
  %v2226 = vpop.f32.mrb[0].mxu0
  %2227 = vmatprep.mubr.bf16.mxu0 0
  %2228 = vmatmul.mubr.bf16.gmra.mrb[0].mxu0 %v2081
  %v2229 = vpop.f32.mrb[0].mxu0
  %v2230 = vadd.f32 %v2105, %v2229
  %v2231 = vpop.f32.mrb[0].mxu0
  %v2232 = vpop.f32.mrb[0].mxu0
  %v2233 = vadd.f32 %v2105, %v2232
  %v2234 = vpop.f32.mrb[0].mxu0
  %2235 = vmatprep.mubr.bf16.mxu0 0
  %2236 = vmatmul.mubr.bf16.gmra.mrb[0].mxu0 %v2082
  %v2237 = vpop.f32.mrb[0].mxu0
  %v2238 = vadd.f32 %v2105, %v2237
  %v2239 = vpop.f32.mrb[0].mxu0
  %v2240 = vpop.f32.mrb[0].mxu0
  %v2241 = vadd.f32 %v2105, %v2240
  %v2242 = vpop.f32.mrb[0].mxu0
  %2243 = vmatprep.mubr.bf16.mxu0 0
  %2244 = vmatmul.mubr.bf16.gmra.mrb[0].mxu0 %v2083
  %v2245 = vpop.f32.mrb[0].mxu0
  %v2246 = vadd.f32 %v2105, %v2245
  %v2247 = vpop.f32.mrb[0].mxu0
  %v2248 = vpop.f32.mrb[0].mxu0
  %v2249 = vadd.f32 %v2105, %v2248
  %v2250 = vpop.f32.mrb[0].mxu0
  %2251 = vdwg.mxu0
  %v2252 = vtanh.pop %v2190
  %v2253 = vtanh.pop %v2193
  %v2254 = vtanh.pop %v2198
  %v2255 = vtanh.pop %v2201
  %v2256 = vtanh.pop %v2206
  %v2257 = vtanh.pop %v2209
  %v2258 = vtanh.pop %v2214
  %v2259 = vtanh.pop %v2217
  %v2260 = vtanh.pop %v2222
  %v2261 = vtanh.pop %v2225
  %v2262 = vtanh.pop %v2230
  %v2263 = vtanh.pop %v2233
  %v2264 = vtanh.pop %v2238
  %v2265 = vtanh.pop %v2241
  %v2266 = vtanh.pop %v2246
  %v2267 = vtanh.pop %v2249
  %v2268 = vpack.c.bf16 %v2253, %v2252
  %v2269 = vpack.c.bf16 %v2255, %v2254
  %v2270 = vpack.c.bf16 %v2257, %v2256
  %v2271 = vpack.c.bf16 %v2259, %v2258
  %v2272 = vpack.c.bf16 %v2261, %v2260
  %v2273 = vpack.c.bf16 %v2263, %v2262
  %v2274 = vpack.c.bf16 %v2265, %v2264
  %v2275 = vpack.c.bf16 %v2267, %v2266
  %v2276 = vld [vmem:[%s1057] sm:$0xf]
  %v2277 = vld [vmem:[%s1057 + $0x4] sm:$0xf]
  %v2278 = vld [vmem:[%s1057 + $0x8] sm:$0xf]
  %v2279 = vld [vmem:[%s1057 + $0xc] sm:$0xf]
  %v2280 = vld [vmem:[%s1057 + $0x10] sm:$0xf]
  %v2281 = vld [vmem:[%s1057 + $0x14] sm:$0xf]
  %v2282 = vld [vmem:[%s1057 + $0x18] sm:$0xf]
  %v2283 = vld [vmem:[%s1057 + $0x1c] sm:$0xf]
  %v2284 = vld [vmem:[%s1057 + $0x20] sm:$0xf]
  %v2285 = vld [vmem:[%s1057 + $0x24] sm:$0xf]
  %v2286 = vld [vmem:[%s1057 + $0x28] sm:$0xf]
  %v2287 = vld [vmem:[%s1057 + $0x2c] sm:$0xf]
  %v2288 = vld [vmem:[%s1057 + $0x30] sm:$0xf]
  %v2289 = vld [vmem:[%s1057 + $0x34] sm:$0xf]
  %v2290 = vld [vmem:[%s1057 + $0x38] sm:$0xf]
  %v2291 = vld [vmem:[%s1057 + $0x3c] sm:$0xf]
  %v2292 = vld [vmem:[%s1074] sm:$0x1]
  %v2294 = vlaneseq
  %v2295 = vshrl.u32 %v2294, 7
  %v2296 = vsub.s32 0, %v2295
  %v2297 = vrot.slane %v2292, %v2296
  %v2315 = vunpack.c.l.b16 %v2276
  %v2316 = vunpack.c.l.b16 %v2277
  %v2317 = vunpack.c.l.b16 %v2278
  %v2318 = vunpack.c.l.b16 %v2279
  %v2319 = vunpack.c.l.b16 %v2280
  %v2320 = vunpack.c.l.b16 %v2281
  %v2321 = vunpack.c.l.b16 %v2282
  %v2322 = vunpack.c.l.b16 %v2283
  %v2323 = vunpack.c.l.b16 %v2284
  %v2324 = vunpack.c.l.b16 %v2285
  %v2325 = vunpack.c.l.b16 %v2286
  %v2326 = vunpack.c.l.b16 %v2287
  %v2327 = vunpack.c.l.b16 %v2288
  %v2328 = vunpack.c.l.b16 %v2289
  %v2329 = vunpack.c.l.b16 %v2290
  %v2330 = vunpack.c.l.b16 %v2291
  %v2331 = vpack.c.b16 %v2316, %v2315
  %v2332 = vpack.c.b16 %v2318, %v2317
  %v2333 = vpack.c.b16 %v2320, %v2319
  %v2334 = vpack.c.b16 %v2322, %v2321
  %v2335 = vpack.c.b16 %v2324, %v2323
  %v2336 = vpack.c.b16 %v2326, %v2325
  %v2337 = vpack.c.b16 %v2328, %v2327
  %v2338 = vpack.c.b16 %v2330, %v2329
  %2347 = vmatprep.subr.bf16.mxu0 0
  %2348 = vmatpush1.bf16.msra.mxu0 %v2331
  %2349 = vmatprep.subr.bf16.mxu0 0
  %2350 = vmatpush1.bf16.msra.mxu0 %v2332
  %2351 = vmatprep.subr.bf16.mxu0 0
  %2352 = vmatpush1.bf16.msra.mxu0 %v2333
  %2353 = vmatprep.subr.bf16.mxu0 0
  %2354 = vmatpush1.bf16.msra.mxu0 %v2334
  %2355 = vmatprep.subr.bf16.mxu0 0
  %2356 = vmatpush1.bf16.msra.mxu0 %v2335
  %2357 = vmatprep.subr.bf16.mxu0 0
  %2358 = vmatpush1.bf16.msra.mxu0 %v2336
  %2359 = vmatprep.subr.bf16.mxu0 0
  %2360 = vmatpush1.bf16.msra.mxu0 %v2337
  %2361 = vmatprep.subr.bf16.mxu0 0
  %2362 = vmatpush1.bf16.msra.mxu0 %v2338
  %2363 = vmatprep.subr.bf16.mxu0 0
  %2364 = vmatpush1.bf16.msra.mxu0 0
  %2365 = vmatprep.subr.bf16.mxu0 0
  %2366 = vmatpush1.bf16.msra.mxu0 0
  %2367 = vmatprep.subr.bf16.mxu0 0
  %2368 = vmatpush1.bf16.msra.mxu0 0
  %2369 = vmatprep.subr.bf16.mxu0 0
  %2370 = vmatpush1.bf16.msra.mxu0 0
  %2371 = vmatprep.subr.bf16.mxu0 0
  %2372 = vmatpush1.bf16.msra.mxu0 0
  %2373 = vmatprep.subr.bf16.mxu0 0
  %2374 = vmatpush1.bf16.msra.mxu0 0
  %2375 = vmatprep.subr.bf16.mxu0 0
  %2376 = vmatpush1.bf16.msra.mxu0 0
  %2377 = vmatprep.subr.bf16.mxu0 0
  %2378 = vmatpush1.bf16.msra.mxu0 0
  %2379 = vmatprep.mubr.bf16.mxu0 0
  %2380 = vmatmul.mubr.bf16.gmra.mrb[0].mxu0 %v2268
  %v2381 = vpop.f32.mrb[0].mxu0
  %v2382 = vadd.f32 %v2297, %v2381
  %v2383 = vpop.f32.mrb[0].mxu0
  %v2384 = vpop.f32.mrb[0].mxu0
  %v2385 = vadd.f32 %v2297, %v2384
  %v2386 = vpop.f32.mrb[0].mxu0
  %2387 = vmatprep.mubr.bf16.mxu0 0
  %2388 = vmatmul.mubr.bf16.gmra.mrb[0].mxu0 %v2269
  %v2389 = vpop.f32.mrb[0].mxu0
  %v2390 = vadd.f32 %v2297, %v2389
  %v2391 = vpop.f32.mrb[0].mxu0
  %v2392 = vpop.f32.mrb[0].mxu0
  %v2393 = vadd.f32 %v2297, %v2392
  %v2394 = vpop.f32.mrb[0].mxu0
  %2395 = vmatprep.mubr.bf16.mxu0 0
  %2396 = vmatmul.mubr.bf16.gmra.mrb[0].mxu0 %v2270
  %v2397 = vpop.f32.mrb[0].mxu0
  %v2398 = vadd.f32 %v2297, %v2397
  %v2399 = vpop.f32.mrb[0].mxu0
  %v2400 = vpop.f32.mrb[0].mxu0
  %v2401 = vadd.f32 %v2297, %v2400
  %v2402 = vpop.f32.mrb[0].mxu0
  %2403 = vmatprep.mubr.bf16.mxu0 0
  %2404 = vmatmul.mubr.bf16.gmra.mrb[0].mxu0 %v2271
  %v2405 = vpop.f32.mrb[0].mxu0
  %v2406 = vadd.f32 %v2297, %v2405
  %v2407 = vpop.f32.mrb[0].mxu0
  %v2408 = vpop.f32.mrb[0].mxu0
  %v2409 = vadd.f32 %v2297, %v2408
  %v2410 = vpop.f32.mrb[0].mxu0
  %2411 = vmatprep.mubr.bf16.mxu0 0
  %2412 = vmatmul.mubr.bf16.gmra.mrb[0].mxu0 %v2272
  %v2413 = vpop.f32.mrb[0].mxu0
  %v2414 = vadd.f32 %v2297, %v2413
  %v2415 = vpop.f32.mrb[0].mxu0
  %v2416 = vpop.f32.mrb[0].mxu0
  %v2417 = vadd.f32 %v2297, %v2416
  %v2418 = vpop.f32.mrb[0].mxu0
  %2419 = vmatprep.mubr.bf16.mxu0 0
  %2420 = vmatmul.mubr.bf16.gmra.mrb[0].mxu0 %v2273
  %v2421 = vpop.f32.mrb[0].mxu0
  %v2422 = vadd.f32 %v2297, %v2421
  %v2423 = vpop.f32.mrb[0].mxu0
  %v2424 = vpop.f32.mrb[0].mxu0
  %v2425 = vadd.f32 %v2297, %v2424
  %v2426 = vpop.f32.mrb[0].mxu0
  %2427 = vmatprep.mubr.bf16.mxu0 0
  %2428 = vmatmul.mubr.bf16.gmra.mrb[0].mxu0 %v2274
  %v2429 = vpop.f32.mrb[0].mxu0
  %v2430 = vadd.f32 %v2297, %v2429
  %v2431 = vpop.f32.mrb[0].mxu0
  %v2432 = vpop.f32.mrb[0].mxu0
  %v2433 = vadd.f32 %v2297, %v2432
  %v2434 = vpop.f32.mrb[0].mxu0
  %2435 = vmatprep.mubr.bf16.mxu0 0
  %2436 = vmatmul.mubr.bf16.gmra.mrb[0].mxu0 %v2275
  %v2437 = vpop.f32.mrb[0].mxu0
  %v2438 = vadd.f32 %v2297, %v2437
  %v2439 = vpop.f32.mrb[0].mxu0
  %v2440 = vpop.f32.mrb[0].mxu0
  %v2441 = vadd.f32 %v2297, %v2440
  %v2442 = vpop.f32.mrb[0].mxu0
  %2443 = vdwg.mxu0
  %v2444 = vtanh.pop %v2382
  %v2445 = vtanh.pop %v2385
  %v2446 = vtanh.pop %v2390
  %v2447 = vtanh.pop %v2393
  %v2448 = vtanh.pop %v2398
  %v2449 = vtanh.pop %v2401
  %v2450 = vtanh.pop %v2406
  %v2451 = vtanh.pop %v2409
  %v2452 = vtanh.pop %v2414
  %v2453 = vtanh.pop %v2417
  %v2454 = vtanh.pop %v2422
  %v2455 = vtanh.pop %v2425
  %v2456 = vtanh.pop %v2430
  %v2457 = vtanh.pop %v2433
  %v2458 = vtanh.pop %v2438
  %v2459 = vtanh.pop %v2441
  %2460 = vst.msk [vmem:[%s4 + $0x80] sm:$0xff] %vm1243, %v2444
  %2461 = vst.msk [vmem:[%s4 + $0x88] sm:$0xff] %vm1243, %v2445
  %2462 = vst.msk [vmem:[%s4 + $0x90] sm:$0xff] %vm1243, %v2446
  %2463 = vst.msk [vmem:[%s4 + $0x98] sm:$0xff] %vm1243, %v2447
  %2464 = vst.msk [vmem:[%s4 + $0xa0] sm:$0xff] %vm1243, %v2448
  %2465 = vst.msk [vmem:[%s4 + $0xa8] sm:$0xff] %vm1243, %v2449
  %2466 = vst.msk [vmem:[%s4 + $0xb0] sm:$0xff] %vm1243, %v2450
  %2467 = vst.msk [vmem:[%s4 + $0xb8] sm:$0xff] %vm1243, %v2451
  %2468 = vst.msk [vmem:[%s4 + $0xc0] sm:$0xff] %vm1243, %v2452
  %2469 = vst.msk [vmem:[%s4 + $0xc8] sm:$0xff] %vm1243, %v2453
  %2470 = vst.msk [vmem:[%s4 + $0xd0] sm:$0xff] %vm1243, %v2454
  %2471 = vst.msk [vmem:[%s4 + $0xd8] sm:$0xff] %vm1243, %v2455
  %2472 = vst.msk [vmem:[%s4 + $0xe0] sm:$0xff] %vm1243, %v2456
  %2473 = vst.msk [vmem:[%s4 + $0xe8] sm:$0xff] %vm1243, %v2457
  %2474 = vst.msk [vmem:[%s4 + $0xf0] sm:$0xff] %vm1243, %v2458
  %2475 = vst.msk [vmem:[%s4 + $0xf8] sm:$0xff] %vm1243, %v2459
  // Predicated region
  $region18: #{navier_stokes_forward.1} parent=0 // pred_check
    _
  $region19: #{navier_stokes_forward.1} parent=0 // pred_check_branch
    %2477 = sbr.rel (0) target = $region21
  $region20: #{navier_stokes_forward.1} parent=0 // pred_region
    _
  $region21: #{navier_stokes_forward.1} parent=0 // pred_fallthru
    _
  // Predicated region
  $region22: #{navier_stokes_forward.1} parent=0 // pred_check
    _
  $region23: #{navier_stokes_forward.1} parent=0 // pred_check_branch
    %2479 = sbr.rel (0) target = $region25
  $region24: #{navier_stokes_forward.1} parent=0 // pred_region
    _
  $region25: #{navier_stokes_forward.1} parent=0 // pred_fallthru
    _

</llo_original>
